<compile_context>
chip_gen: v7x
topology: tpu7x:2x2x1
jax: 0.10.0
libtpu: 0.0.40
codegen_flags: <defaults>
</compile_context>

<pallas_src>
import functools

import jax
import jax.numpy as jnp
from jax.experimental import pallas as pl
from jax.experimental.pallas import tpu as pltpu

LANES = 128          # pad all channel axes to the 128-lane vreg width
CIN = 3
STEM_C = 24          # stem output channels (split 12 / 12 in the shuffle unit)
CONV5_C = 64
EMB = 32


# --------------------------------------------------------------------------
# Fused backbone kernel: one grid step == one image.
# --------------------------------------------------------------------------
def _fused_backbone_kernel(
    patch_ref,                      # (1, M, 128) bf16 : im2col stem patches (K padded to 128)
    wstem_ref, bstem_ref,           # (128,128) bf16 , (1,128) f32
    wpw1_ref, bpw1_ref,             # (128,128) bf16 , (1,128) f32
    wdw_ref, bdw_ref,               # (16,128)  f32  , (1,128) f32
    wpw2_ref, bpw2_ref,             # (128,128) bf16 , (1,128) f32
    w5y_ref, w5b_ref, b5_ref,       # (128,128) bf16 x2 , (1,128) f32
    wfc_ref, bfc_ref,               # (128,128) bf16 , (1,128) f32
    o_ref,                          # (1, 8, 128) f32 (lane-dense output tile)
    pad_ref,                        # VMEM scratch (Ho+2, ceil8(Wo+2), 128) f32
    *, Ho, Wo,
):
    C = LANES
    M = Ho * Wo

    # ---- stem 3x3/s2 conv as an MXU matmul over im2col patches (+folded BN, ReLU) ----
    y = jnp.dot(patch_ref[0], wstem_ref[...], preferred_element_type=jnp.float32)
    y = jnp.maximum(y + bstem_ref[...], 0.0)              # (M,128); lanes >= 24 stay 0
    y_bf = y.astype(jnp.bfloat16)

    # ---- shuffle-unit branch: pw1 (1x1 conv on x2 = channels 12..23, ReLU) ----
    b1 = jnp.dot(y_bf, wpw1_ref[...], preferred_element_type=jnp.float32)
    b1 = jnp.maximum(b1 + bpw1_ref[...], 0.0)             # branch in lanes 0..11

    # ---- depthwise 3x3, stride 1, pad 1 (+folded BN, no ReLU): lane-dense VPU MAC ----
    pad_ref[...] = jnp.zeros_like(pad_ref)
    pad_ref[1:1 + Ho, 1:1 + Wo, :] = b1.reshape(Ho, Wo, C)
    acc = jnp.zeros((Ho, Wo, C), jnp.float32)
    for dh in range(3):
        for dw in range(3):
            acc = acc + pad_ref[dh:dh + Ho, dw:dw + Wo, :] * wdw_ref[dh * 3 + dw, :]
    acc = acc + bdw_ref[...]

    # ---- pw2 (1x1 conv, ReLU) ----
    b2 = jnp.dot(acc.reshape(M, C).astype(jnp.bfloat16), wpw2_ref[...],
                 preferred_element_type=jnp.float32)
    b2 = jnp.maximum(b2 + bpw2_ref[...], 0.0)

    # ---- conv5 (1x1, ReLU): concat([x1, branch]) + channel_shuffle folded into
    #      the two pre-permuted weight halves (w5y reads x1 lanes, w5b branch lanes) ----
    c5 = (jnp.dot(y_bf, w5y_ref[...], preferred_element_type=jnp.float32)
          + jnp.dot(b2.astype(jnp.bfloat16), w5b_ref[...],
                    preferred_element_type=jnp.float32))
    c5 = jnp.maximum(c5 + b5_ref[...], 0.0)               # lanes 0..63 real, rest 0

    # ---- global average pool over spatial positions ----
    feat = jnp.mean(c5, axis=0, keepdims=True)            # (1,128)

    # ---- fc -> embedding (lanes 0..31 real, rest 0) ----
    emb = jnp.dot(feat.astype(jnp.bfloat16), wfc_ref[...],
                  preferred_element_type=jnp.float32) + bfc_ref[...]

    # ---- z = emb / ||emb||_2  (dim=1, keepdim); EUP rsqrt, eps clamp for safety ----
    ssq = jnp.sum(emb * emb, axis=1, keepdims=True)
    z = emb * jax.lax.rsqrt(jnp.maximum(ssq, 1e-24))
    o_ref[...] = jnp.broadcast_to(z, o_ref.shape).astype(o_ref.dtype)


# --------------------------------------------------------------------------
# Plain-JAX glue (layout plumbing only)
# --------------------------------------------------------------------------
def im2col_3x3_s2(x_padded):
    """3x3 / stride-2 patches from NHWC padded tensor -> (N, Ho, Wo, 9*C).

    Column order is tap-major / channel-minor: index = (dh*3+dw)*C + c, matching
    the synthetic stem weight layout below.
    """
    N, Hp, Wp, C = x_padded.shape
    Ho = (Hp - 3) // 2 + 1
    Wo = (Wp - 3) // 2 + 1
    cols = []
    for dh in range(3):
        for dw in range(3):
            cols.append(x_padded[:, dh:dh + 2 * Ho - 1:2, dw:dw + 2 * Wo - 1:2, :])
    return jnp.concatenate(cols, axis=-1)


# --------------------------------------------------------------------------
# Parameters: logical (PyTorch-like) shapes, then packed/padded/folded for the kernel.
# BatchNorms are folded into conv biases.
# --------------------------------------------------------------------------
def init_params(key, cin=CIN, stem_c=STEM_C, conv5_c=CONV5_C, emb=EMB):
    ks = jax.random.split(key, 12)

    def w(k, shape, scale):
        return scale * jax.random.normal(k, shape, jnp.float32)

    c = stem_c // 2
    return {
        "stem_w": w(ks[0], (9 * cin, stem_c), 0.1),
        "stem_b": w(ks[1], (stem_c,), 0.01),
        "pw1_w": w(ks[2], (c, c), 0.1),
        "pw1_b": w(ks[3], (c,), 0.01),
        "dw_w": w(ks[4], (9, c), 0.1),
        "dw_b": w(ks[5], (c,), 0.01),
        "pw2_w": w(ks[6], (c, c), 0.1),
        "pw2_b": w(ks[7], (c,), 0.01),
        "conv5_w": w(ks[8], (stem_c, conv5_c), 0.1),
        "conv5_b": w(ks[9], (conv5_c,), 0.01),
        "fc_w": w(ks[10], (conv5_c, emb), 0.1),
        "fc_b": w(ks[11], (emb,), 0.01),
    }


def pack_params(p, stem_c=STEM_C):
    """Pad channels to 128 lanes, cast matmul weights to bf16, and fold
    concat + channel_shuffle(groups=2) into conv5's weight (row permutation)."""
    c = stem_c // 2

    def pad_mat(w, r0=0, c0=0, rows=LANES, cols=LANES, dtype=jnp.bfloat16):
        out = jnp.zeros((rows, cols), jnp.float32)
        out = out.at[r0:r0 + w.shape[0], c0:c0 + w.shape[1]].set(w)
        return out.astype(dtype)

    def pad_vec(b):
        out = jnp.zeros((1, LANES), jnp.float32)
        return out.at[0, :b.shape[0]].set(b)

    # channel_shuffle(groups=2): shuffled[k] = concat[(k % 2) * c + k // 2]
    # => conv5 row used for concat channel ci is k(ci) = 2*(ci % c) + ci // c.
    kidx = jnp.array([2 * (ci % c) + ci // c for ci in range(2 * c)], jnp.int32)
    w5_perm = p["conv5_w"][kidx]          # (2c, conv5_c) reordered to concat order

    return {
        "wstem": pad_mat(p["stem_w"]),
        "bstem": pad_vec(p["stem_b"]),
        "wpw1": pad_mat(p["pw1_w"], r0=c),          # reads x2 (lanes c..2c-1) -> branch lanes 0..c-1
        "bpw1": pad_vec(p["pw1_b"]),
        "wdw": pad_mat(p["dw_w"], rows=16, dtype=jnp.float32),
        "bdw": pad_vec(p["dw_b"]),
        "wpw2": pad_mat(p["pw2_w"]),
        "bpw2": pad_vec(p["pw2_b"]),
        "w5y": pad_mat(w5_perm[:c]),                # x1 half of folded conv5
        "w5b": pad_mat(w5_perm[c:]),                # branch half of folded conv5
        "b5": pad_vec(p["conv5_b"]),
        "wfc": pad_mat(p["fc_w"]),
        "bfc": pad_vec(p["fc_b"]),
    }


# --------------------------------------------------------------------------
# Forward pass (SimaseNet.forward)
# --------------------------------------------------------------------------
def simase_forward(packed, x_nchw):
    # NCHW (PyTorch) -> NHWC (TPU lanes = channels)
    x = jnp.transpose(x_nchw, (0, 2, 3, 1)).astype(jnp.float32)
    N = x.shape[0]

    # stem im2col (layout plumbing); pad K = 9*Cin up to 128 lanes, cast bf16 once.
    xp = jnp.pad(x, ((0, 0), (1, 1), (1, 1), (0, 0)))
    patches = im2col_3x3_s2(xp)                              # (N, Ho, Wo, 9*Cin)
    Ho, Wo, K = patches.shape[1], patches.shape[2], patches.shape[3]
    M = Ho * Wo
    patches = jnp.pad(patches, ((0, 0), (0, 0), (0, 0), (0, LANES - K)))
    patches = patches.reshape(N, M, LANES).astype(jnp.bfloat16)

    # TODO(synk): full shufflenet_v2_x0_5 has a 3x3 maxpool + 3 stages of repeated
    # units before conv5; this reduced backbone keeps one representative unit.

    PH = Ho + 2
    PW = ((Wo + 2 + 7) // 8) * 8   # sublane-aligned padded width for the dwconv scratch

    weight_order = ["wstem", "bstem", "wpw1", "bpw1", "wdw", "bdw",
                    "wpw2", "bpw2", "w5y", "w5b", "b5", "wfc", "bfc"]
    w_args = [packed[k] for k in weight_order]
    full2d = lambda i: (0, 0)
    w_specs = [pl.BlockSpec(a.shape, full2d) for a in w_args]

    out = pl.pallas_call(
        functools.partial(_fused_backbone_kernel, Ho=Ho, Wo=Wo),
        out_shape=jax.ShapeDtypeStruct((N, 8, LANES), jnp.float32),
        grid=(N,),
        in_specs=[pl.BlockSpec((1, M, LANES), lambda i: (i, 0, 0))] + w_specs,
        out_specs=pl.BlockSpec((1, 8, LANES), lambda i: (i, 0, 0)),
        scratch_shapes=[pltpu.VMEM((PH, PW, LANES), jnp.float32)],
        compiler_params=pltpu.CompilerParams(
            dimension_semantics=("parallel",)),
    )(patches, *w_args)

    # Row 0 of each lane-dense tile holds the normalized embedding; lanes >= EMB are 0.
    return out[:, 0, :EMB]


# --------------------------------------------------------------------------
if __name__ == "__main__":
    key = jax.random.PRNGKey(0)
    k_param, k_x = jax.random.split(key)

    params = init_params(k_param)
    packed = pack_params(params)
    x = jax.random.normal(k_x, (2, 3, 16, 16), jnp.float32)   # NCHW input, small shapes

    fwd = jax.jit(simase_forward)
    z = jax.block_until_ready(fwd(packed, x))

    assert z.shape == (2, EMB), z.shape
    norms = jnp.linalg.norm(z, axis=1)
    assert jnp.allclose(norms, 1.0, atol=1e-3), norms
    print("KERNEL_OK")
</pallas_src>

<mosaic_0001>
module attributes {stable_mosaic.version = 11 : i64} {
  func.func @_fused_backbone_kernel(%arg0: i32, %arg1: memref<1x64x128xbf16, #tpu.memory_space<vmem>>, %arg2: memref<128x128xbf16, #tpu.memory_space<vmem>>, %arg3: memref<1x128xf32, #tpu.memory_space<vmem>>, %arg4: memref<128x128xbf16, #tpu.memory_space<vmem>>, %arg5: memref<1x128xf32, #tpu.memory_space<vmem>>, %arg6: memref<16x128xf32, #tpu.memory_space<vmem>>, %arg7: memref<1x128xf32, #tpu.memory_space<vmem>>, %arg8: memref<128x128xbf16, #tpu.memory_space<vmem>>, %arg9: memref<1x128xf32, #tpu.memory_space<vmem>>, %arg10: memref<128x128xbf16, #tpu.memory_space<vmem>>, %arg11: memref<128x128xbf16, #tpu.memory_space<vmem>>, %arg12: memref<1x128xf32, #tpu.memory_space<vmem>>, %arg13: memref<128x128xbf16, #tpu.memory_space<vmem>>, %arg14: memref<1x128xf32, #tpu.memory_space<vmem>>, %arg15: memref<1x8x128xf32, #tpu.memory_space<vmem>>, %arg16: memref<10x16x128xf32, #tpu.memory_space<vmem>>) attributes {dimension_semantics = [#tpu.dimension_semantics<parallel>], iteration_bounds = array<i64: 2>, scalar_prefetch = 0 : i64, scratch_operands = 1 : i64, tpu.core_type = #tpu.core_type<tc>, window_params = [{transform_indices = @transform_0, window_bounds = array<i64: 1, 64, 128>}, {pipeline_mode = #tpu.pipeline_mode<synchronous>, transform_indices = @transform_1, window_bounds = array<i64: 128, 128>}, {pipeline_mode = #tpu.pipeline_mode<synchronous>, transform_indices = @transform_2, window_bounds = array<i64: 1, 128>}, {pipeline_mode = #tpu.pipeline_mode<synchronous>, transform_indices = @transform_3, window_bounds = array<i64: 128, 128>}, {pipeline_mode = #tpu.pipeline_mode<synchronous>, transform_indices = @transform_4, window_bounds = array<i64: 1, 128>}, {pipeline_mode = #tpu.pipeline_mode<synchronous>, transform_indices = @transform_5, window_bounds = array<i64: 16, 128>}, {pipeline_mode = #tpu.pipeline_mode<synchronous>, transform_indices = @transform_6, window_bounds = array<i64: 1, 128>}, {pipeline_mode = #tpu.pipeline_mode<synchronous>, transform_indices = @transform_7, window_bounds = array<i64: 128, 128>}, {pipeline_mode = #tpu.pipeline_mode<synchronous>, transform_indices = @transform_8, window_bounds = array<i64: 1, 128>}, {pipeline_mode = #tpu.pipeline_mode<synchronous>, transform_indices = @transform_9, window_bounds = array<i64: 128, 128>}, {pipeline_mode = #tpu.pipeline_mode<synchronous>, transform_indices = @transform_10, window_bounds = array<i64: 128, 128>}, {pipeline_mode = #tpu.pipeline_mode<synchronous>, transform_indices = @transform_11, window_bounds = array<i64: 1, 128>}, {pipeline_mode = #tpu.pipeline_mode<synchronous>, transform_indices = @transform_12, window_bounds = array<i64: 128, 128>}, {pipeline_mode = #tpu.pipeline_mode<synchronous>, transform_indices = @transform_13, window_bounds = array<i64: 1, 128>}, {transform_indices = @transform_14, window_bounds = array<i64: 1, 8, 128>}]} {
    %c0 = arith.constant 0 : index
    %c0_0 = arith.constant 0 : index
    %c0_1 = arith.constant 0 : index
    %0 = vector.load %arg1[%c0, %c0_0, %c0_1] : memref<1x64x128xbf16, #tpu.memory_space<vmem>>, vector<1x64x128xbf16>
    %1 = vector.shape_cast %0 : vector<1x64x128xbf16> to vector<64x128xbf16>
    %c0_2 = arith.constant 0 : index
    %c0_3 = arith.constant 0 : index
    %2 = vector.load %arg2[%c0_2, %c0_3] : memref<128x128xbf16, #tpu.memory_space<vmem>>, vector<128x128xbf16>
    %cst = arith.constant dense<0.000000e+00> : vector<64x128xf32>
    %3 = tpu.matmul %1, %2, %cst {dimension_numbers = #tpu.dot_dimension_numbers<[1], [0], [0], [1], [0, 0, 1, 1], [], []>} : vector<64x128xbf16>, vector<128x128xbf16>, vector<64x128xf32> -> vector<64x128xf32>
    %c0_4 = arith.constant 0 : index
    %c0_5 = arith.constant 0 : index
    %4 = vector.load %arg3[%c0_4, %c0_5] : memref<1x128xf32, #tpu.memory_space<vmem>>, vector<1x128xf32>
    %5 = vector.broadcast %4 : vector<1x128xf32> to vector<64x128xf32>
    %6 = arith.addf %3, %5 : vector<64x128xf32>
    %cst_6 = arith.constant 0.000000e+00 : f32
    %7 = vector.broadcast %cst_6 : f32 to vector<64x128xf32>
    %8 = arith.maximumf %6, %7 : vector<64x128xf32>
    %9 = arith.truncf %8 : vector<64x128xf32> to vector<64x128xbf16>
    %c0_7 = arith.constant 0 : index
    %c0_8 = arith.constant 0 : index
    %10 = vector.load %arg4[%c0_7, %c0_8] : memref<128x128xbf16, #tpu.memory_space<vmem>>, vector<128x128xbf16>
    %cst_9 = arith.constant dense<0.000000e+00> : vector<64x128xf32>
    %11 = tpu.matmul %9, %10, %cst_9 {dimension_numbers = #tpu.dot_dimension_numbers<[1], [0], [0], [1], [0, 0, 1, 1], [], []>} : vector<64x128xbf16>, vector<128x128xbf16>, vector<64x128xf32> -> vector<64x128xf32>
    %c0_10 = arith.constant 0 : index
    %c0_11 = arith.constant 0 : index
    %12 = vector.load %arg5[%c0_10, %c0_11] : memref<1x128xf32, #tpu.memory_space<vmem>>, vector<1x128xf32>
    %13 = vector.broadcast %12 : vector<1x128xf32> to vector<64x128xf32>
    %14 = arith.addf %11, %13 : vector<64x128xf32>
    %cst_12 = arith.constant 0.000000e+00 : f32
    %15 = vector.broadcast %cst_12 : f32 to vector<64x128xf32>
    %16 = arith.maximumf %14, %15 : vector<64x128xf32>
    %cst_13 = arith.constant 0.000000e+00 : f32
    %17 = vector.broadcast %cst_13 : f32 to vector<10x16x128xf32>
    %c0_14 = arith.constant 0 : index
    %c0_15 = arith.constant 0 : index
    %c0_16 = arith.constant 0 : index
    %18 = vector.load %arg16[%c0_14, %c0_15, %c0_16] : memref<10x16x128xf32, #tpu.memory_space<vmem>>, vector<10x16x128xf32>
    tpu.vector_store %arg16[%c0_14, %c0_15, %c0_16], %17 {strides = array<i32>} : memref<10x16x128xf32, #tpu.memory_space<vmem>>, vector<10x16x128xf32>,
    %19 = vector.shape_cast %16 : vector<64x128xf32> to vector<8x8x128xf32>
    %c1 = arith.constant 1 : index
    %c1_17 = arith.constant 1 : index
    %c0_18 = arith.constant 0 : index
    %20 = vector.load %arg16[%c1, %c1_17, %c0_18] : memref<10x16x128xf32, #tpu.memory_space<vmem>>, vector<8x8x128xf32>
    tpu.vector_store %arg16[%c1, %c1_17, %c0_18], %19 {strides = array<i32>} : memref<10x16x128xf32, #tpu.memory_space<vmem>>, vector<8x8x128xf32>,
    %cst_19 = arith.constant 0.000000e+00 : f32
    %21 = vector.broadcast %cst_19 : f32 to vector<8x8x128xf32>
    %c0_20 = arith.constant 0 : index
    %c0_21 = arith.constant 0 : index
    %c0_22 = arith.constant 0 : index
    %22 = vector.load %arg16[%c0_20, %c0_21, %c0_22] : memref<10x16x128xf32, #tpu.memory_space<vmem>>, vector<8x8x128xf32>
    %c0_23 = arith.constant 0 : index
    %c0_24 = arith.constant 0 : index
    %23 = vector.load %arg6[%c0_23, %c0_24] : memref<16x128xf32, #tpu.memory_space<vmem>>, vector<1x128xf32>
    %24 = vector.shape_cast %23 : vector<1x128xf32> to vector<128xf32>
    %25 = vector.shape_cast %24 : vector<128xf32> to vector<1x1x128xf32>
    %26 = vector.broadcast %25 : vector<1x1x128xf32> to vector<8x8x128xf32>
    %27 = arith.mulf %22, %26 : vector<8x8x128xf32>
    %28 = arith.addf %21, %27 : vector<8x8x128xf32>
    %c0_25 = arith.constant 0 : index
    %c1_26 = arith.constant 1 : index
    %c0_27 = arith.constant 0 : index
    %29 = vector.load %arg16[%c0_25, %c1_26, %c0_27] : memref<10x16x128xf32, #tpu.memory_space<vmem>>, vector<8x8x128xf32>
    %c1_28 = arith.constant 1 : index
    %c0_29 = arith.constant 0 : index
    %30 = vector.load %arg6[%c1_28, %c0_29] : memref<16x128xf32, #tpu.memory_space<vmem>>, vector<1x128xf32>
    %31 = vector.shape_cast %30 : vector<1x128xf32> to vector<128xf32>
    %32 = vector.shape_cast %31 : vector<128xf32> to vector<1x1x128xf32>
    %33 = vector.broadcast %32 : vector<1x1x128xf32> to vector<8x8x128xf32>
    %34 = arith.mulf %29, %33 : vector<8x8x128xf32>
    %35 = arith.addf %28, %34 : vector<8x8x128xf32>
    %c0_30 = arith.constant 0 : index
    %c2 = arith.constant 2 : index
    %c0_31 = arith.constant 0 : index
    %36 = vector.load %arg16[%c0_30, %c2, %c0_31] : memref<10x16x128xf32, #tpu.memory_space<vmem>>, vector<8x8x128xf32>
    %c2_32 = arith.constant 2 : index
    %c0_33 = arith.constant 0 : index
    %37 = vector.load %arg6[%c2_32, %c0_33] : memref<16x128xf32, #tpu.memory_space<vmem>>, vector<1x128xf32>
    %38 = vector.shape_cast %37 : vector<1x128xf32> to vector<128xf32>
    %39 = vector.shape_cast %38 : vector<128xf32> to vector<1x1x128xf32>
    %40 = vector.broadcast %39 : vector<1x1x128xf32> to vector<8x8x128xf32>
    %41 = arith.mulf %36, %40 : vector<8x8x128xf32>
    %42 = arith.addf %35, %41 : vector<8x8x128xf32>
    %c1_34 = arith.constant 1 : index
    %c0_35 = arith.constant 0 : index
    %c0_36 = arith.constant 0 : index
    %43 = vector.load %arg16[%c1_34, %c0_35, %c0_36] : memref<10x16x128xf32, #tpu.memory_space<vmem>>, vector<8x8x128xf32>
    %c3 = arith.constant 3 : index
    %c0_37 = arith.constant 0 : index
    %44 = vector.load %arg6[%c3, %c0_37] : memref<16x128xf32, #tpu.memory_space<vmem>>, vector<1x128xf32>
    %45 = vector.shape_cast %44 : vector<1x128xf32> to vector<128xf32>
    %46 = vector.shape_cast %45 : vector<128xf32> to vector<1x1x128xf32>
    %47 = vector.broadcast %46 : vector<1x1x128xf32> to vector<8x8x128xf32>
    %48 = arith.mulf %43, %47 : vector<8x8x128xf32>
    %49 = arith.addf %42, %48 : vector<8x8x128xf32>
    %c1_38 = arith.constant 1 : index
    %c1_39 = arith.constant 1 : index
    %c0_40 = arith.constant 0 : index
    %50 = vector.load %arg16[%c1_38, %c1_39, %c0_40] : memref<10x16x128xf32, #tpu.memory_space<vmem>>, vector<8x8x128xf32>
    %c4 = arith.constant 4 : index
    %c0_41 = arith.constant 0 : index
    %51 = vector.load %arg6[%c4, %c0_41] : memref<16x128xf32, #tpu.memory_space<vmem>>, vector<1x128xf32>
    %52 = vector.shape_cast %51 : vector<1x128xf32> to vector<128xf32>
    %53 = vector.shape_cast %52 : vector<128xf32> to vector<1x1x128xf32>
    %54 = vector.broadcast %53 : vector<1x1x128xf32> to vector<8x8x128xf32>
    %55 = arith.mulf %50, %54 : vector<8x8x128xf32>
    %56 = arith.addf %49, %55 : vector<8x8x128xf32>
    %c1_42 = arith.constant 1 : index
    %c2_43 = arith.constant 2 : index
    %c0_44 = arith.constant 0 : index
    %57 = vector.load %arg16[%c1_42, %c2_43, %c0_44] : memref<10x16x128xf32, #tpu.memory_space<vmem>>, vector<8x8x128xf32>
    %c5 = arith.constant 5 : index
    %c0_45 = arith.constant 0 : index
    %58 = vector.load %arg6[%c5, %c0_45] : memref<16x128xf32, #tpu.memory_space<vmem>>, vector<1x128xf32>
    %59 = vector.shape_cast %58 : vector<1x128xf32> to vector<128xf32>
    %60 = vector.shape_cast %59 : vector<128xf32> to vector<1x1x128xf32>
    %61 = vector.broadcast %60 : vector<1x1x128xf32> to vector<8x8x128xf32>
    %62 = arith.mulf %57, %61 : vector<8x8x128xf32>
    %63 = arith.addf %56, %62 : vector<8x8x128xf32>
    %c2_46 = arith.constant 2 : index
    %c0_47 = arith.constant 0 : index
    %c0_48 = arith.constant 0 : index
    %64 = vector.load %arg16[%c2_46, %c0_47, %c0_48] : memref<10x16x128xf32, #tpu.memory_space<vmem>>, vector<8x8x128xf32>
    %c6 = arith.constant 6 : index
    %c0_49 = arith.constant 0 : index
    %65 = vector.load %arg6[%c6, %c0_49] : memref<16x128xf32, #tpu.memory_space<vmem>>, vector<1x128xf32>
    %66 = vector.shape_cast %65 : vector<1x128xf32> to vector<128xf32>
    %67 = vector.shape_cast %66 : vector<128xf32> to vector<1x1x128xf32>
    %68 = vector.broadcast %67 : vector<1x1x128xf32> to vector<8x8x128xf32>
    %69 = arith.mulf %64, %68 : vector<8x8x128xf32>
    %70 = arith.addf %63, %69 : vector<8x8x128xf32>
    %c2_50 = arith.constant 2 : index
    %c1_51 = arith.constant 1 : index
    %c0_52 = arith.constant 0 : index
    %71 = vector.load %arg16[%c2_50, %c1_51, %c0_52] : memref<10x16x128xf32, #tpu.memory_space<vmem>>, vector<8x8x128xf32>
    %c7 = arith.constant 7 : index
    %c0_53 = arith.constant 0 : index
    %72 = vector.load %arg6[%c7, %c0_53] : memref<16x128xf32, #tpu.memory_space<vmem>>, vector<1x128xf32>
    %73 = vector.shape_cast %72 : vector<1x128xf32> to vector<128xf32>
    %74 = vector.shape_cast %73 : vector<128xf32> to vector<1x1x128xf32>
    %75 = vector.broadcast %74 : vector<1x1x128xf32> to vector<8x8x128xf32>
    %76 = arith.mulf %71, %75 : vector<8x8x128xf32>
    %77 = arith.addf %70, %76 : vector<8x8x128xf32>
    %c2_54 = arith.constant 2 : index
    %c2_55 = arith.constant 2 : index
    %c0_56 = arith.constant 0 : index
    %78 = vector.load %arg16[%c2_54, %c2_55, %c0_56] : memref<10x16x128xf32, #tpu.memory_space<vmem>>, vector<8x8x128xf32>
    %c8 = arith.constant 8 : index
    %c0_57 = arith.constant 0 : index
    %79 = vector.load %arg6[%c8, %c0_57] : memref<16x128xf32, #tpu.memory_space<vmem>>, vector<1x128xf32>
    %80 = vector.shape_cast %79 : vector<1x128xf32> to vector<128xf32>
    %81 = vector.shape_cast %80 : vector<128xf32> to vector<1x1x128xf32>
    %82 = vector.broadcast %81 : vector<1x1x128xf32> to vector<8x8x128xf32>
    %83 = arith.mulf %78, %82 : vector<8x8x128xf32>
    %84 = arith.addf %77, %83 : vector<8x8x128xf32>
    %c0_58 = arith.constant 0 : index
    %c0_59 = arith.constant 0 : index
    %85 = vector.load %arg7[%c0_58, %c0_59] : memref<1x128xf32, #tpu.memory_space<vmem>>, vector<1x128xf32>
    %86 = vector.shape_cast %85 : vector<1x128xf32> to vector<1x1x128xf32>
    %87 = vector.broadcast %86 : vector<1x1x128xf32> to vector<8x8x128xf32>
    %88 = arith.addf %84, %87 : vector<8x8x128xf32>
    %89 = vector.shape_cast %88 : vector<8x8x128xf32> to vector<64x128xf32>
    %90 = arith.truncf %89 : vector<64x128xf32> to vector<64x128xbf16>
    %c0_60 = arith.constant 0 : index
    %c0_61 = arith.constant 0 : index
    %91 = vector.load %arg8[%c0_60, %c0_61] : memref<128x128xbf16, #tpu.memory_space<vmem>>, vector<128x128xbf16>
    %cst_62 = arith.constant dense<0.000000e+00> : vector<64x128xf32>
    %92 = tpu.matmul %90, %91, %cst_62 {dimension_numbers = #tpu.dot_dimension_numbers<[1], [0], [0], [1], [0, 0, 1, 1], [], []>} : vector<64x128xbf16>, vector<128x128xbf16>, vector<64x128xf32> -> vector<64x128xf32>
    %c0_63 = arith.constant 0 : index
    %c0_64 = arith.constant 0 : index
    %93 = vector.load %arg9[%c0_63, %c0_64] : memref<1x128xf32, #tpu.memory_space<vmem>>, vector<1x128xf32>
    %94 = vector.broadcast %93 : vector<1x128xf32> to vector<64x128xf32>
    %95 = arith.addf %92, %94 : vector<64x128xf32>
    %cst_65 = arith.constant 0.000000e+00 : f32
    %96 = vector.broadcast %cst_65 : f32 to vector<64x128xf32>
    %97 = arith.maximumf %95, %96 : vector<64x128xf32>
    %c0_66 = arith.constant 0 : index
    %c0_67 = arith.constant 0 : index
    %98 = vector.load %arg10[%c0_66, %c0_67] : memref<128x128xbf16, #tpu.memory_space<vmem>>, vector<128x128xbf16>
    %cst_68 = arith.constant dense<0.000000e+00> : vector<64x128xf32>
    %99 = tpu.matmul %9, %98, %cst_68 {dimension_numbers = #tpu.dot_dimension_numbers<[1], [0], [0], [1], [0, 0, 1, 1], [], []>} : vector<64x128xbf16>, vector<128x128xbf16>, vector<64x128xf32> -> vector<64x128xf32>
    %100 = arith.truncf %97 : vector<64x128xf32> to vector<64x128xbf16>
    %c0_69 = arith.constant 0 : index
    %c0_70 = arith.constant 0 : index
    %101 = vector.load %arg11[%c0_69, %c0_70] : memref<128x128xbf16, #tpu.memory_space<vmem>>, vector<128x128xbf16>
    %cst_71 = arith.constant dense<0.000000e+00> : vector<64x128xf32>
    %102 = tpu.matmul %100, %101, %cst_71 {dimension_numbers = #tpu.dot_dimension_numbers<[1], [0], [0], [1], [0, 0, 1, 1], [], []>} : vector<64x128xbf16>, vector<128x128xbf16>, vector<64x128xf32> -> vector<64x128xf32>
    %103 = arith.addf %99, %102 : vector<64x128xf32>
    %c0_72 = arith.constant 0 : index
    %c0_73 = arith.constant 0 : index
    %104 = vector.load %arg12[%c0_72, %c0_73] : memref<1x128xf32, #tpu.memory_space<vmem>>, vector<1x128xf32>
    %105 = vector.broadcast %104 : vector<1x128xf32> to vector<64x128xf32>
    %106 = arith.addf %103, %105 : vector<64x128xf32>
    %cst_74 = arith.constant 0.000000e+00 : f32
    %107 = vector.broadcast %cst_74 : f32 to vector<64x128xf32>
    %108 = arith.maximumf %106, %107 : vector<64x128xf32>
    %cst_75 = arith.constant dense<0.000000e+00> : vector<128xf32>
    %109 = vector.multi_reduction <add>, %108, %cst_75 [0] : vector<64x128xf32> to vector<128xf32>
    %110 = vector.shape_cast %109 : vector<128xf32> to vector<1x128xf32>
    %cst_76 = arith.constant 6.400000e+01 : f32
    %111 = vector.broadcast %cst_76 : f32 to vector<1x128xf32>
    %112 = arith.divf %110, %111 : vector<1x128xf32>
    %113 = arith.truncf %112 : vector<1x128xf32> to vector<1x128xbf16>
    %c0_77 = arith.constant 0 : index
    %c0_78 = arith.constant 0 : index
    %114 = vector.load %arg13[%c0_77, %c0_78] : memref<128x128xbf16, #tpu.memory_space<vmem>>, vector<128x128xbf16>
    %cst_79 = arith.constant dense<0.000000e+00> : vector<1x128xf32>
    %115 = tpu.matmul %113, %114, %cst_79 {dimension_numbers = #tpu.dot_dimension_numbers<[1], [0], [0], [1], [0, 0, 1, 1], [], []>} : vector<1x128xbf16>, vector<128x128xbf16>, vector<1x128xf32> -> vector<1x128xf32>
    %c0_80 = arith.constant 0 : index
    %c0_81 = arith.constant 0 : index
    %116 = vector.load %arg14[%c0_80, %c0_81] : memref<1x128xf32, #tpu.memory_space<vmem>>, vector<1x128xf32>
    %117 = arith.addf %115, %116 : vector<1x128xf32>
    %118 = arith.mulf %117, %117 : vector<1x128xf32>
    %cst_82 = arith.constant dense<0.000000e+00> : vector<1xf32>
    %119 = vector.multi_reduction <add>, %118, %cst_82 [1] : vector<1x128xf32> to vector<1xf32>
    %120 = vector.shape_cast %119 : vector<1xf32> to vector<1x1xf32>
    %cst_83 = arith.constant 1.000000e-24 : f32
    %121 = vector.broadcast %cst_83 : f32 to vector<1x1xf32>
    %122 = arith.maximumf %120, %121 : vector<1x1xf32>
    %123 = math.rsqrt %122 : vector<1x1xf32>
    %124 = vector.broadcast %123 : vector<1x1xf32> to vector<1x128xf32>
    %125 = arith.mulf %117, %124 : vector<1x128xf32>
    %126 = vector.shape_cast %125 : vector<1x128xf32> to vector<1x1x128xf32>
    %127 = vector.broadcast %126 : vector<1x1x128xf32> to vector<1x8x128xf32>
    %c0_84 = arith.constant 0 : index
    %c0_85 = arith.constant 0 : index
    %c0_86 = arith.constant 0 : index
    %128 = vector.load %arg15[%c0_84, %c0_85, %c0_86] : memref<1x8x128xf32, #tpu.memory_space<vmem>>, vector<1x8x128xf32>
    tpu.vector_store %arg15[%c0_84, %c0_85, %c0_86], %127 {strides = array<i32>} : memref<1x8x128xf32, #tpu.memory_space<vmem>>, vector<1x8x128xf32>,
    return
  }
  func.func @transform_0(%arg0: i32) -> (i32, i32, i32) {
    %c0_i32 = arith.constant 0 : i32
    %c0_i32_0 = arith.constant 0 : i32
    %c0_i32_1 = arith.constant 0 : i32
    return %arg0, %c0_i32, %c0_i32_0 : i32, i32, i32
  }
  func.func @transform_1(%arg0: i32) -> (i32, i32) {
    %c0_i32 = arith.constant 0 : i32
    %c0_i32_0 = arith.constant 0 : i32
    %c0_i32_1 = arith.constant 0 : i32
    return %c0_i32, %c0_i32_0 : i32, i32
  }
  func.func @transform_2(%arg0: i32) -> (i32, i32) {
    %c0_i32 = arith.constant 0 : i32
    %c0_i32_0 = arith.constant 0 : i32
    %c0_i32_1 = arith.constant 0 : i32
    return %c0_i32, %c0_i32_0 : i32, i32
  }
  func.func @transform_3(%arg0: i32) -> (i32, i32) {
    %c0_i32 = arith.constant 0 : i32
    %c0_i32_0 = arith.constant 0 : i32
    %c0_i32_1 = arith.constant 0 : i32
    return %c0_i32, %c0_i32_0 : i32, i32
  }
  func.func @transform_4(%arg0: i32) -> (i32, i32) {
    %c0_i32 = arith.constant 0 : i32
    %c0_i32_0 = arith.constant 0 : i32
    %c0_i32_1 = arith.constant 0 : i32
    return %c0_i32, %c0_i32_0 : i32, i32
  }
  func.func @transform_5(%arg0: i32) -> (i32, i32) {
    %c0_i32 = arith.constant 0 : i32
    %c0_i32_0 = arith.constant 0 : i32
    %c0_i32_1 = arith.constant 0 : i32
    return %c0_i32, %c0_i32_0 : i32, i32
  }
  func.func @transform_6(%arg0: i32) -> (i32, i32) {
    %c0_i32 = arith.constant 0 : i32
    %c0_i32_0 = arith.constant 0 : i32
    %c0_i32_1 = arith.constant 0 : i32
    return %c0_i32, %c0_i32_0 : i32, i32
  }
  func.func @transform_7(%arg0: i32) -> (i32, i32) {
    %c0_i32 = arith.constant 0 : i32
    %c0_i32_0 = arith.constant 0 : i32
    %c0_i32_1 = arith.constant 0 : i32
    return %c0_i32, %c0_i32_0 : i32, i32
  }
  func.func @transform_8(%arg0: i32) -> (i32, i32) {
    %c0_i32 = arith.constant 0 : i32
    %c0_i32_0 = arith.constant 0 : i32
    %c0_i32_1 = arith.constant 0 : i32
    return %c0_i32, %c0_i32_0 : i32, i32
  }
  func.func @transform_9(%arg0: i32) -> (i32, i32) {
    %c0_i32 = arith.constant 0 : i32
    %c0_i32_0 = arith.constant 0 : i32
    %c0_i32_1 = arith.constant 0 : i32
    return %c0_i32, %c0_i32_0 : i32, i32
  }
  func.func @transform_10(%arg0: i32) -> (i32, i32) {
    %c0_i32 = arith.constant 0 : i32
    %c0_i32_0 = arith.constant 0 : i32
    %c0_i32_1 = arith.constant 0 : i32
    return %c0_i32, %c0_i32_0 : i32, i32
  }
  func.func @transform_11(%arg0: i32) -> (i32, i32) {
    %c0_i32 = arith.constant 0 : i32
    %c0_i32_0 = arith.constant 0 : i32
    %c0_i32_1 = arith.constant 0 : i32
    return %c0_i32, %c0_i32_0 : i32, i32
  }
  func.func @transform_12(%arg0: i32) -> (i32, i32) {
    %c0_i32 = arith.constant 0 : i32
    %c0_i32_0 = arith.constant 0 : i32
    %c0_i32_1 = arith.constant 0 : i32
    return %c0_i32, %c0_i32_0 : i32, i32
  }
  func.func @transform_13(%arg0: i32) -> (i32, i32) {
    %c0_i32 = arith.constant 0 : i32
    %c0_i32_0 = arith.constant 0 : i32
    %c0_i32_1 = arith.constant 0 : i32
    return %c0_i32, %c0_i32_0 : i32, i32
  }
  func.func @transform_14(%arg0: i32) -> (i32, i32, i32) {
    %c0_i32 = arith.constant 0 : i32
    %c0_i32_0 = arith.constant 0 : i32
    %c0_i32_1 = arith.constant 0 : i32
    return %arg0, %c0_i32, %c0_i32_0 : i32, i32, i32
  }
}

</mosaic_0001>

<llo_original>
// kernel: simase_forward.1
$region0: #{simase_forward.1}
  #allocation0 [shape = 'u32[]', space=smem, size = 0x4, offset = 0x4, fixed_abs, tag = 'smem constant byte address 0x4 - core index']
  #allocation1 [shape = 'u32[144,128]{1,0:T(1,128)}', space=vmem, size = 0x12000, scoped, tag = 'internal scratch']
  #allocation2 [shape = 'f32[10,16,128]{2,1,0:T(8,128)}', space=vmem, size = 0x14000, scoped, tag = 'scratch operand']
  %s0 = inlined_call_operand.vmem [shape: bf16[2,64,128], index: 0, kind: input, shape index: {}]
  %s1 = inlined_call_operand.vmem [shape: bf16[128,128], index: 1, kind: input, shape index: {}]
  %s2 = inlined_call_operand.vmem [shape: f32[1,128], index: 2, kind: input, shape index: {}]
  %s3 = inlined_call_operand.vmem [shape: bf16[128,128], index: 3, kind: input, shape index: {}]
  %s4 = inlined_call_operand.vmem [shape: f32[1,128], index: 4, kind: input, shape index: {}]
  %s5 = inlined_call_operand.vmem [shape: f32[16,128], index: 5, kind: input, shape index: {}]
  %s6 = inlined_call_operand.vmem [shape: f32[1,128], index: 6, kind: input, shape index: {}]
  %s7 = inlined_call_operand.vmem [shape: bf16[128,128], index: 7, kind: input, shape index: {}]
  %s8 = inlined_call_operand.vmem [shape: f32[1,128], index: 8, kind: input, shape index: {}]
  %s9 = inlined_call_operand.vmem [shape: bf16[128,128], index: 9, kind: input, shape index: {}]
  %s10 = inlined_call_operand.vmem [shape: bf16[128,128], index: 10, kind: input, shape index: {}]
  %s11 = inlined_call_operand.vmem [shape: f32[1,128], index: 11, kind: input, shape index: {}]
  %s12 = inlined_call_operand.vmem [shape: bf16[128,128], index: 12, kind: input, shape index: {}]
  %s13 = inlined_call_operand.vmem [shape: f32[1,128], index: 13, kind: input, shape index: {}]
  %s14 = inlined_call_operand.vmem [shape: f32[2,8,128], index: 14, kind: output, shape index: {}]
  %s15 = sld [smem:[#allocation0]]
  $region89: #{simase_forward.1} parent=0
    _
  %s17 = ssub.s32 1, %s15
  %s18 = scalar_select 0, %s17, %s15
  loop: start=0, step=1, limit=4
  $region2: #{simase_forward.1} parent=0 // loop_pre_header
    _
  $region3: #{simase_forward.1} parent=0 // loop_header
    %s20 = sphi 0, %s24
    %p21 = scmp.ge.s32.totalorder %s20, 4
    %s30 = sphi 0, %s32
    %s33 = sphi 0, %s30
    %s34 = sphi 0, %s33
    %s50 = sphi 0, %s34
    %s54 = sphi 0, %s54
    %s56 = sphi 0, %s54
    %s57 = sphi 0, %s56
    %s71 = sphi 0, %s57
    %s75 = sphi 0, %s75
    %s77 = sphi 0, %s75
    %s78 = sphi 0, %s77
    %s92 = sphi 0, %s78
    %s96 = sphi 0, %s96
    %s98 = sphi 0, %s96
    %s99 = sphi 0, %s98
    %s113 = sphi 0, %s99
    %s117 = sphi 0, %s117
    %s119 = sphi 0, %s117
    %s120 = sphi 0, %s119
    %s134 = sphi 0, %s120
    %s138 = sphi 0, %s138
    %s140 = sphi 0, %s138
    %s141 = sphi 0, %s140
    %s155 = sphi 0, %s141
    %s159 = sphi 0, %s159
    %s161 = sphi 0, %s159
    %s162 = sphi 0, %s161
    %s176 = sphi 0, %s162
    %s180 = sphi 0, %s180
    %s182 = sphi 0, %s180
    %s183 = sphi 0, %s182
    %s197 = sphi 0, %s183
    %s201 = sphi 0, %s201
    %s203 = sphi 0, %s201
    %s204 = sphi 0, %s203
    %s218 = sphi 0, %s204
    %s222 = sphi 0, %s222
    %s224 = sphi 0, %s222
    %s225 = sphi 0, %s224
    %s239 = sphi 0, %s225
    %s243 = sphi 0, %s243
    %s245 = sphi 0, %s243
    %s246 = sphi 0, %s245
    %s260 = sphi 0, %s246
    %s264 = sphi 0, %s264
    %s266 = sphi 0, %s264
    %s267 = sphi 0, %s266
    %s281 = sphi 0, %s267
    %s285 = sphi 0, %s285
    %s287 = sphi 0, %s285
    %s288 = sphi 0, %s287
    %s302 = sphi 0, %s288
    %s306 = sphi 0, %s306
    %s308 = sphi 0, %s306
    %s309 = sphi 0, %s308
    %s323 = sphi 0, %s309
    %s329 = sphi 0, %s331
    %s332 = sphi 0, %s329
    %s333 = sphi 0, %s332
    %s349 = sphi 0, %s333
  $region4: #{simase_forward.1} parent=0 // loop_header_branch
    %23 = sbr.rel (%p21) target = $region8
  $region5: #{simase_forward.1} parent=0 // loop_body
    %s25 = ssub.s32 %s20, 1
    %s26 = ssub.s32 %s20, 2
    %s27 = sadd.s32 %s20, 1
    %s28 = ssub.s32 %s20, %s27
    %p29 = scmp.eq.s32.totalorder %s28, 0
    %s31 = sadd.s32 %s30, 1
    %s32 = scalar_select %p29, %s30, %s31
    %p35 = pneg %p29
    %p36 = scmp.eq.s32.totalorder %s20, 1
    %p37 = por %p35, %p36
    %p38 = scmp.ne.s32.totalorder %s30, %s33
    %p39 = scmp.eq.s32.totalorder %s20, 0
    %p40 = por %p38, %p39
    %p41 = scmp.ne.s32.totalorder %s30, %s33
    %p42 = scmp.eq.s32.totalorder %s25, 1
    %p43 = por %p41, %p42
    %p44 = scmp.ne.s32.totalorder %s33, %s34
    %p45 = scmp.eq.s32.totalorder %s25, 0
    %p46 = por %p44, %p45
    %p47 = scmp.ne.s32.totalorder %s33, %s34
    %p48 = scmp.eq.s32.totalorder %s26, 1
    %p49 = por %p47, %p48
    %p51 = scmp.ne.s32.totalorder %s34, %s50
    %p52 = scmp.eq.s32.totalorder %s26, 0
    %p53 = por %p51, %p52
    %s55 = sadd.s32 %s54, 1
    %p58 = scmp.eq.s32.totalorder %s20, 1
    %p59 = scmp.ne.s32.totalorder %s54, %s56
    %p60 = scmp.eq.s32.totalorder %s20, 0
    %p61 = por %p59, %p60
    %p62 = scmp.ne.s32.totalorder %s54, %s56
    %p63 = scmp.eq.s32.totalorder %s25, 1
    %p64 = por %p62, %p63
    %p65 = scmp.ne.s32.totalorder %s56, %s57
    %p66 = scmp.eq.s32.totalorder %s25, 0
    %p67 = por %p65, %p66
    %p68 = scmp.ne.s32.totalorder %s56, %s57
    %p69 = scmp.eq.s32.totalorder %s26, 1
    %p70 = por %p68, %p69
    %p72 = scmp.ne.s32.totalorder %s57, %s71
    %p73 = scmp.eq.s32.totalorder %s26, 0
    %p74 = por %p72, %p73
    %s76 = sadd.s32 %s75, 1
    %p79 = scmp.eq.s32.totalorder %s20, 1
    %p80 = scmp.ne.s32.totalorder %s75, %s77
    %p81 = scmp.eq.s32.totalorder %s20, 0
    %p82 = por %p80, %p81
    %p83 = scmp.ne.s32.totalorder %s75, %s77
    %p84 = scmp.eq.s32.totalorder %s25, 1
    %p85 = por %p83, %p84
    %p86 = scmp.ne.s32.totalorder %s77, %s78
    %p87 = scmp.eq.s32.totalorder %s25, 0
    %p88 = por %p86, %p87
    %p89 = scmp.ne.s32.totalorder %s77, %s78
    %p90 = scmp.eq.s32.totalorder %s26, 1
    %p91 = por %p89, %p90
    %p93 = scmp.ne.s32.totalorder %s78, %s92
    %p94 = scmp.eq.s32.totalorder %s26, 0
    %p95 = por %p93, %p94
    %s97 = sadd.s32 %s96, 1
    %p100 = scmp.eq.s32.totalorder %s20, 1
    %p101 = scmp.ne.s32.totalorder %s96, %s98
    %p102 = scmp.eq.s32.totalorder %s20, 0
    %p103 = por %p101, %p102
    %p104 = scmp.ne.s32.totalorder %s96, %s98
    %p105 = scmp.eq.s32.totalorder %s25, 1
    %p106 = por %p104, %p105
    %p107 = scmp.ne.s32.totalorder %s98, %s99
    %p108 = scmp.eq.s32.totalorder %s25, 0
    %p109 = por %p107, %p108
    %p110 = scmp.ne.s32.totalorder %s98, %s99
    %p111 = scmp.eq.s32.totalorder %s26, 1
    %p112 = por %p110, %p111
    %p114 = scmp.ne.s32.totalorder %s99, %s113
    %p115 = scmp.eq.s32.totalorder %s26, 0
    %p116 = por %p114, %p115
    %s118 = sadd.s32 %s117, 1
    %p121 = scmp.eq.s32.totalorder %s20, 1
    %p122 = scmp.ne.s32.totalorder %s117, %s119
    %p123 = scmp.eq.s32.totalorder %s20, 0
    %p124 = por %p122, %p123
    %p125 = scmp.ne.s32.totalorder %s117, %s119
    %p126 = scmp.eq.s32.totalorder %s25, 1
    %p127 = por %p125, %p126
    %p128 = scmp.ne.s32.totalorder %s119, %s120
    %p129 = scmp.eq.s32.totalorder %s25, 0
    %p130 = por %p128, %p129
    %p131 = scmp.ne.s32.totalorder %s119, %s120
    %p132 = scmp.eq.s32.totalorder %s26, 1
    %p133 = por %p131, %p132
    %p135 = scmp.ne.s32.totalorder %s120, %s134
    %p136 = scmp.eq.s32.totalorder %s26, 0
    %p137 = por %p135, %p136
    %s139 = sadd.s32 %s138, 1
    %p142 = scmp.eq.s32.totalorder %s20, 1
    %p143 = scmp.ne.s32.totalorder %s138, %s140
    %p144 = scmp.eq.s32.totalorder %s20, 0
    %p145 = por %p143, %p144
    %p146 = scmp.ne.s32.totalorder %s138, %s140
    %p147 = scmp.eq.s32.totalorder %s25, 1
    %p148 = por %p146, %p147
    %p149 = scmp.ne.s32.totalorder %s140, %s141
    %p150 = scmp.eq.s32.totalorder %s25, 0
    %p151 = por %p149, %p150
    %p152 = scmp.ne.s32.totalorder %s140, %s141
    %p153 = scmp.eq.s32.totalorder %s26, 1
    %p154 = por %p152, %p153
    %p156 = scmp.ne.s32.totalorder %s141, %s155
    %p157 = scmp.eq.s32.totalorder %s26, 0
    %p158 = por %p156, %p157
    %s160 = sadd.s32 %s159, 1
    %p163 = scmp.eq.s32.totalorder %s20, 1
    %p164 = scmp.ne.s32.totalorder %s159, %s161
    %p165 = scmp.eq.s32.totalorder %s20, 0
    %p166 = por %p164, %p165
    %p167 = scmp.ne.s32.totalorder %s159, %s161
    %p168 = scmp.eq.s32.totalorder %s25, 1
    %p169 = por %p167, %p168
    %p170 = scmp.ne.s32.totalorder %s161, %s162
    %p171 = scmp.eq.s32.totalorder %s25, 0
    %p172 = por %p170, %p171
    %p173 = scmp.ne.s32.totalorder %s161, %s162
    %p174 = scmp.eq.s32.totalorder %s26, 1
    %p175 = por %p173, %p174
    %p177 = scmp.ne.s32.totalorder %s162, %s176
    %p178 = scmp.eq.s32.totalorder %s26, 0
    %p179 = por %p177, %p178
    %s181 = sadd.s32 %s180, 1
    %p184 = scmp.eq.s32.totalorder %s20, 1
    %p185 = scmp.ne.s32.totalorder %s180, %s182
    %p186 = scmp.eq.s32.totalorder %s20, 0
    %p187 = por %p185, %p186
    %p188 = scmp.ne.s32.totalorder %s180, %s182
    %p189 = scmp.eq.s32.totalorder %s25, 1
    %p190 = por %p188, %p189
    %p191 = scmp.ne.s32.totalorder %s182, %s183
    %p192 = scmp.eq.s32.totalorder %s25, 0
    %p193 = por %p191, %p192
    %p194 = scmp.ne.s32.totalorder %s182, %s183
    %p195 = scmp.eq.s32.totalorder %s26, 1
    %p196 = por %p194, %p195
    %p198 = scmp.ne.s32.totalorder %s183, %s197
    %p199 = scmp.eq.s32.totalorder %s26, 0
    %p200 = por %p198, %p199
    %s202 = sadd.s32 %s201, 1
    %p205 = scmp.eq.s32.totalorder %s20, 1
    %p206 = scmp.ne.s32.totalorder %s201, %s203
    %p207 = scmp.eq.s32.totalorder %s20, 0
    %p208 = por %p206, %p207
    %p209 = scmp.ne.s32.totalorder %s201, %s203
    %p210 = scmp.eq.s32.totalorder %s25, 1
    %p211 = por %p209, %p210
    %p212 = scmp.ne.s32.totalorder %s203, %s204
    %p213 = scmp.eq.s32.totalorder %s25, 0
    %p214 = por %p212, %p213
    %p215 = scmp.ne.s32.totalorder %s203, %s204
    %p216 = scmp.eq.s32.totalorder %s26, 1
    %p217 = por %p215, %p216
    %p219 = scmp.ne.s32.totalorder %s204, %s218
    %p220 = scmp.eq.s32.totalorder %s26, 0
    %p221 = por %p219, %p220
    %s223 = sadd.s32 %s222, 1
    %p226 = scmp.eq.s32.totalorder %s20, 1
    %p227 = scmp.ne.s32.totalorder %s222, %s224
    %p228 = scmp.eq.s32.totalorder %s20, 0
    %p229 = por %p227, %p228
    %p230 = scmp.ne.s32.totalorder %s222, %s224
    %p231 = scmp.eq.s32.totalorder %s25, 1
    %p232 = por %p230, %p231
    %p233 = scmp.ne.s32.totalorder %s224, %s225
    %p234 = scmp.eq.s32.totalorder %s25, 0
    %p235 = por %p233, %p234
    %p236 = scmp.ne.s32.totalorder %s224, %s225
    %p237 = scmp.eq.s32.totalorder %s26, 1
    %p238 = por %p236, %p237
    %p240 = scmp.ne.s32.totalorder %s225, %s239
    %p241 = scmp.eq.s32.totalorder %s26, 0
    %p242 = por %p240, %p241
    %s244 = sadd.s32 %s243, 1
    %p247 = scmp.eq.s32.totalorder %s20, 1
    %p248 = scmp.ne.s32.totalorder %s243, %s245
    %p249 = scmp.eq.s32.totalorder %s20, 0
    %p250 = por %p248, %p249
    %p251 = scmp.ne.s32.totalorder %s243, %s245
    %p252 = scmp.eq.s32.totalorder %s25, 1
    %p253 = por %p251, %p252
    %p254 = scmp.ne.s32.totalorder %s245, %s246
    %p255 = scmp.eq.s32.totalorder %s25, 0
    %p256 = por %p254, %p255
    %p257 = scmp.ne.s32.totalorder %s245, %s246
    %p258 = scmp.eq.s32.totalorder %s26, 1
    %p259 = por %p257, %p258
    %p261 = scmp.ne.s32.totalorder %s246, %s260
    %p262 = scmp.eq.s32.totalorder %s26, 0
    %p263 = por %p261, %p262
    %s265 = sadd.s32 %s264, 1
    %p268 = scmp.eq.s32.totalorder %s20, 1
    %p269 = scmp.ne.s32.totalorder %s264, %s266
    %p270 = scmp.eq.s32.totalorder %s20, 0
    %p271 = por %p269, %p270
    %p272 = scmp.ne.s32.totalorder %s264, %s266
    %p273 = scmp.eq.s32.totalorder %s25, 1
    %p274 = por %p272, %p273
    %p275 = scmp.ne.s32.totalorder %s266, %s267
    %p276 = scmp.eq.s32.totalorder %s25, 0
    %p277 = por %p275, %p276
    %p278 = scmp.ne.s32.totalorder %s266, %s267
    %p279 = scmp.eq.s32.totalorder %s26, 1
    %p280 = por %p278, %p279
    %p282 = scmp.ne.s32.totalorder %s267, %s281
    %p283 = scmp.eq.s32.totalorder %s26, 0
    %p284 = por %p282, %p283
    %s286 = sadd.s32 %s285, 1
    %p289 = scmp.eq.s32.totalorder %s20, 1
    %p290 = scmp.ne.s32.totalorder %s285, %s287
    %p291 = scmp.eq.s32.totalorder %s20, 0
    %p292 = por %p290, %p291
    %p293 = scmp.ne.s32.totalorder %s285, %s287
    %p294 = scmp.eq.s32.totalorder %s25, 1
    %p295 = por %p293, %p294
    %p296 = scmp.ne.s32.totalorder %s287, %s288
    %p297 = scmp.eq.s32.totalorder %s25, 0
    %p298 = por %p296, %p297
    %p299 = scmp.ne.s32.totalorder %s287, %s288
    %p300 = scmp.eq.s32.totalorder %s26, 1
    %p301 = por %p299, %p300
    %p303 = scmp.ne.s32.totalorder %s288, %s302
    %p304 = scmp.eq.s32.totalorder %s26, 0
    %p305 = por %p303, %p304
    %s307 = sadd.s32 %s306, 1
    %p310 = scmp.eq.s32.totalorder %s20, 1
    %p311 = scmp.ne.s32.totalorder %s306, %s308
    %p312 = scmp.eq.s32.totalorder %s20, 0
    %p313 = por %p311, %p312
    %p314 = scmp.ne.s32.totalorder %s306, %s308
    %p315 = scmp.eq.s32.totalorder %s25, 1
    %p316 = por %p314, %p315
    %p317 = scmp.ne.s32.totalorder %s308, %s309
    %p318 = scmp.eq.s32.totalorder %s25, 0
    %p319 = por %p317, %p318
    %p320 = scmp.ne.s32.totalorder %s308, %s309
    %p321 = scmp.eq.s32.totalorder %s26, 1
    %p322 = por %p320, %p321
    %p324 = scmp.ne.s32.totalorder %s309, %s323
    %p325 = scmp.eq.s32.totalorder %s26, 0
    %p326 = por %p324, %p325
    %s327 = ssub.s32 %s20, %s27
    %p328 = scmp.eq.s32.totalorder %s327, 0
    %s330 = sadd.s32 %s329, 1
    %s331 = scalar_select %p328, %s329, %s330
    %p334 = pneg %p328
    %p335 = scmp.eq.s32.totalorder %s20, 1
    %p336 = por %p334, %p335
    %p337 = scmp.ne.s32.totalorder %s329, %s332
    %p338 = scmp.eq.s32.totalorder %s20, 0
    %p339 = por %p337, %p338
    %p340 = scmp.ne.s32.totalorder %s329, %s332
    %p341 = scmp.eq.s32.totalorder %s25, 1
    %p342 = por %p340, %p341
    %p343 = scmp.ne.s32.totalorder %s332, %s333
    %p344 = scmp.eq.s32.totalorder %s25, 0
    %p345 = por %p343, %p344
    %p346 = scmp.ne.s32.totalorder %s332, %s333
    %p347 = scmp.eq.s32.totalorder %s26, 1
    %p348 = por %p346, %p347
    %p350 = scmp.ne.s32.totalorder %s333, %s349
    %p351 = scmp.eq.s32.totalorder %s26, 0
    %p352 = por %p350, %p351
    %p353 = scmp.le.s32.totalorder 1, %s20
    %p354 = scmp.lt.s32.totalorder %s20, 3
    %p355 = pnand %p353, %p354
    %p356 = pneg %p355
    // Predicated region
    $region9: #{simase_forward.1} parent=5 // pred_check
      _
    $region10: #{simase_forward.1} parent=5 // pred_check_branch
      %358 = sbr.rel (%p355) target = $region12
    $region11: #{simase_forward.1} parent=5 // pred_region
      %s359 = ssub.s32 %s20, 1
      // Predicated region
      $region13: #{simase_forward.1} parent=11 // pred_check
        %p360 = pneg %p67
      $region14: #{simase_forward.1} parent=11 // pred_check_branch
        %362 = sbr.rel (%p360) target = $region16
      $region15: #{simase_forward.1} parent=11 // pred_region
        _
      $region16: #{simase_forward.1} parent=11 // pred_fallthru
        _
      // Predicated region
      $region17: #{simase_forward.1} parent=11 // pred_check
        %p363 = pneg %p88
      $region18: #{simase_forward.1} parent=11 // pred_check_branch
        %365 = sbr.rel (%p363) target = $region20
      $region19: #{simase_forward.1} parent=11 // pred_region
        _
      $region20: #{simase_forward.1} parent=11 // pred_fallthru
        _
      // Predicated region
      $region21: #{simase_forward.1} parent=11 // pred_check
        %p366 = pneg %p109
      $region22: #{simase_forward.1} parent=11 // pred_check_branch
        %368 = sbr.rel (%p366) target = $region24
      $region23: #{simase_forward.1} parent=11 // pred_region
        _
      $region24: #{simase_forward.1} parent=11 // pred_fallthru
        _
      // Predicated region
      $region25: #{simase_forward.1} parent=11 // pred_check
        %p369 = pneg %p130
      $region26: #{simase_forward.1} parent=11 // pred_check_branch
        %371 = sbr.rel (%p369) target = $region28
      $region27: #{simase_forward.1} parent=11 // pred_region
        _
      $region28: #{simase_forward.1} parent=11 // pred_fallthru
        _
      // Predicated region
      $region29: #{simase_forward.1} parent=11 // pred_check
        %p372 = pneg %p151
      $region30: #{simase_forward.1} parent=11 // pred_check_branch
        %374 = sbr.rel (%p372) target = $region32
      $region31: #{simase_forward.1} parent=11 // pred_region
        _
      $region32: #{simase_forward.1} parent=11 // pred_fallthru
        _
      // Predicated region
      $region33: #{simase_forward.1} parent=11 // pred_check
        %p375 = pneg %p172
      $region34: #{simase_forward.1} parent=11 // pred_check_branch
        %377 = sbr.rel (%p375) target = $region36
      $region35: #{simase_forward.1} parent=11 // pred_region
        _
      $region36: #{simase_forward.1} parent=11 // pred_fallthru
        _
      // Predicated region
      $region37: #{simase_forward.1} parent=11 // pred_check
        %p378 = pneg %p193
      $region38: #{simase_forward.1} parent=11 // pred_check_branch
        %380 = sbr.rel (%p378) target = $region40
      $region39: #{simase_forward.1} parent=11 // pred_region
        _
      $region40: #{simase_forward.1} parent=11 // pred_fallthru
        _
      // Predicated region
      $region41: #{simase_forward.1} parent=11 // pred_check
        %p381 = pneg %p214
      $region42: #{simase_forward.1} parent=11 // pred_check_branch
        %383 = sbr.rel (%p381) target = $region44
      $region43: #{simase_forward.1} parent=11 // pred_region
        _
      $region44: #{simase_forward.1} parent=11 // pred_fallthru
        _
      // Predicated region
      $region45: #{simase_forward.1} parent=11 // pred_check
        %p384 = pneg %p235
      $region46: #{simase_forward.1} parent=11 // pred_check_branch
        %386 = sbr.rel (%p384) target = $region48
      $region47: #{simase_forward.1} parent=11 // pred_region
        _
      $region48: #{simase_forward.1} parent=11 // pred_fallthru
        _
      // Predicated region
      $region49: #{simase_forward.1} parent=11 // pred_check
        %p387 = pneg %p256
      $region50: #{simase_forward.1} parent=11 // pred_check_branch
        %389 = sbr.rel (%p387) target = $region52
      $region51: #{simase_forward.1} parent=11 // pred_region
        _
      $region52: #{simase_forward.1} parent=11 // pred_fallthru
        _
      // Predicated region
      $region53: #{simase_forward.1} parent=11 // pred_check
        %p390 = pneg %p277
      $region54: #{simase_forward.1} parent=11 // pred_check_branch
        %392 = sbr.rel (%p390) target = $region56
      $region55: #{simase_forward.1} parent=11 // pred_region
        _
      $region56: #{simase_forward.1} parent=11 // pred_fallthru
        _
      // Predicated region
      $region57: #{simase_forward.1} parent=11 // pred_check
        %p393 = pneg %p298
      $region58: #{simase_forward.1} parent=11 // pred_check_branch
        %395 = sbr.rel (%p393) target = $region60
      $region59: #{simase_forward.1} parent=11 // pred_region
        _
      $region60: #{simase_forward.1} parent=11 // pred_fallthru
        _
      // Predicated region
      $region61: #{simase_forward.1} parent=11 // pred_check
        %p396 = pneg %p319
      $region62: #{simase_forward.1} parent=11 // pred_check_branch
        %398 = sbr.rel (%p396) target = $region64
      $region63: #{simase_forward.1} parent=11 // pred_region
        _
      $region64: #{simase_forward.1} parent=11 // pred_fallthru
        _
    $region12: #{simase_forward.1} parent=5 // pred_fallthru
      _
    %p399 = scmp.lt.s32.totalorder %s20, 2
    // Predicated region
    $region65: #{simase_forward.1} parent=5 // pred_check
      %p400 = pneg %p399
    $region66: #{simase_forward.1} parent=5 // pred_check_branch
      %402 = sbr.rel (%p400) target = $region68
    $region67: #{simase_forward.1} parent=5 // pred_region
      // Predicated region
      $region69: #{simase_forward.1} parent=67 // pred_check
        %p403 = pneg %p40
      $region70: #{simase_forward.1} parent=67 // pred_check_branch
        %405 = sbr.rel (%p403) target = $region72
      $region71: #{simase_forward.1} parent=67 // pred_region
        %p406 = scmp.lt.s32.totalorder %s20, 1
        %s407 = scalar_select %p406, %s20, 1
        %s408 = smul.addr %s407, 8
        %s409 = smul.addr %s408, 4
        %s410 = scalar_lea.vmem %s0, %s409
      $region72: #{simase_forward.1} parent=67 // pred_fallthru
        _
    $region68: #{simase_forward.1} parent=5 // pred_fallthru
      _
    %p411 = scmp.le.s32.totalorder 1, %s20
    %p412 = scmp.lt.s32.totalorder %s20, 3
    %p413 = pnand %p411, %p412
    %p414 = pneg %p413
    // Predicated region
    $region73: #{simase_forward.1} parent=5 // pred_check
      _
    $region74: #{simase_forward.1} parent=5 // pred_check_branch
      %416 = sbr.rel (%p413) target = $region76
    $region75: #{simase_forward.1} parent=5 // pred_region
      %s417 = ssub.s32 %s20, 1
      %p418 = scmp.lt.s32.totalorder %s25, 1
      %s419 = scalar_select %p418, %s25, 1
      %s420 = smul.addr %s419, 8
      %s421 = smul.addr %s420, 4
      %s422 = scalar_lea.vmem %s0, %s421
      %p423 = pneg %p46
      %p424 = pneg %p43
      %p425 = pneg %p67
      %p426 = pneg %p64
      %p427 = pneg %p88
      %p428 = pneg %p85
      %p429 = pneg %p109
      %p430 = pneg %p106
      %p431 = pneg %p130
      %p432 = pneg %p127
      %p433 = pneg %p151
      %p434 = pneg %p148
      %p435 = pneg %p172
      %p436 = pneg %p169
      %p437 = pneg %p193
      %p438 = pneg %p190
      %p439 = pneg %p214
      %p440 = pneg %p211
      %p441 = pneg %p235
      %p442 = pneg %p232
      %p443 = pneg %p256
      %p444 = pneg %p253
      %p445 = pneg %p277
      %p446 = pneg %p274
      %p447 = pneg %p298
      %p448 = pneg %p295
      %p449 = pneg %p319
      %p450 = pneg %p316
      %p451 = pneg %p345
      %p452 = pneg %p342
      %p453 = scmp.lt.s32.totalorder %s25, 1
      %s454 = scalar_select %p453, %s25, 1
      %s455 = smul.addr %s454, 8
      %s456 = scalar_lea.vmem %s14, %s455
      %p457 = scmp.lt.s32.totalorder %s25, 1
      %s458 = scalar_select %p457, %s25, 1
      %s459 = smul.addr %s458, 8
      %s460 = smul.addr %s459, 4
      %s461 = scalar_lea.vmem %s0, %s460
      %p462 = scmp.lt.s32.totalorder %s25, 1
      %s463 = scalar_select %p462, %s25, 1
      %s464 = smul.addr %s463, 8
      %s465 = scalar_lea.vmem %s14, %s464
      %v467 = vld [vmem:[%s461] sm:$0xf]
      %v468 = vld [vmem:[%s461 + $0x4] sm:$0xf]
      %v469 = vld [vmem:[%s461 + $0x8] sm:$0xf]
      %v470 = vld [vmem:[%s461 + $0xc] sm:$0xf]
      %v471 = vld [vmem:[%s461 + $0x10] sm:$0xf]
      %v472 = vld [vmem:[%s461 + $0x14] sm:$0xf]
      %v473 = vld [vmem:[%s461 + $0x18] sm:$0xf]
      %v474 = vld [vmem:[%s461 + $0x1c] sm:$0xf]
      %v475 = vld [vmem:[%s1] sm:$0xf]
      %v476 = vld [vmem:[%s1 + $0x4] sm:$0xf]
      %v477 = vld [vmem:[%s1 + $0x8] sm:$0xf]
      %v478 = vld [vmem:[%s1 + $0xc] sm:$0xf]
      %v479 = vld [vmem:[%s1 + $0x10] sm:$0xf]
      %v480 = vld [vmem:[%s1 + $0x14] sm:$0xf]
      %v481 = vld [vmem:[%s1 + $0x18] sm:$0xf]
      %v482 = vld [vmem:[%s1 + $0x1c] sm:$0xf]
      %v483 = vld [vmem:[%s1 + $0x20] sm:$0xf]
      %v484 = vld [vmem:[%s1 + $0x24] sm:$0xf]
      %v485 = vld [vmem:[%s1 + $0x28] sm:$0xf]
      %v486 = vld [vmem:[%s1 + $0x2c] sm:$0xf]
      %v487 = vld [vmem:[%s1 + $0x30] sm:$0xf]
      %v488 = vld [vmem:[%s1 + $0x34] sm:$0xf]
      %v489 = vld [vmem:[%s1 + $0x38] sm:$0xf]
      %v490 = vld [vmem:[%s1 + $0x3c] sm:$0xf]
      %v491 = vld [vmem:[%s2] sm:$0x1]
      %v493 = vlaneseq
      %v494 = vshrl.u32 %v493, 7
      %v495 = vsub.s32 0, %v494
      %v496 = vrot.slane %v491, %v495
      %v506 = vunpack.c.l.b16 %v467
      %v507 = vunpack.c.l.b16 %v468
      %v508 = vunpack.c.l.b16 %v469
      %v509 = vunpack.c.l.b16 %v470
      %v510 = vunpack.c.l.b16 %v471
      %v511 = vunpack.c.l.b16 %v472
      %v512 = vunpack.c.l.b16 %v473
      %v513 = vunpack.c.l.b16 %v474
      %v514 = vpack.c.b16 %v507, %v506
      %v515 = vpack.c.b16 %v509, %v508
      %v516 = vpack.c.b16 %v511, %v510
      %v517 = vpack.c.b16 %v513, %v512
      %v538 = vunpack.c.l.b16 %v475
      %v539 = vunpack.c.l.b16 %v476
      %v540 = vunpack.c.l.b16 %v477
      %v541 = vunpack.c.l.b16 %v478
      %v542 = vunpack.c.l.b16 %v479
      %v543 = vunpack.c.l.b16 %v480
      %v544 = vunpack.c.l.b16 %v481
      %v545 = vunpack.c.l.b16 %v482
      %v546 = vunpack.c.l.b16 %v483
      %v547 = vunpack.c.l.b16 %v484
      %v548 = vunpack.c.l.b16 %v485
      %v549 = vunpack.c.l.b16 %v486
      %v550 = vunpack.c.l.b16 %v487
      %v551 = vunpack.c.l.b16 %v488
      %v552 = vunpack.c.l.b16 %v489
      %v553 = vunpack.c.l.b16 %v490
      %v554 = vpack.c.b16 %v539, %v538
      %v555 = vpack.c.b16 %v541, %v540
      %v556 = vpack.c.b16 %v543, %v542
      %v557 = vpack.c.b16 %v545, %v544
      %v558 = vpack.c.b16 %v547, %v546
      %v559 = vpack.c.b16 %v549, %v548
      %v560 = vpack.c.b16 %v551, %v550
      %v561 = vpack.c.b16 %v553, %v552
      %570 = vmatprep.subr.bf16.mxu0 0
      %571 = vmatpush1.bf16.msra.mxu0 %v554
      %572 = vmatprep.subr.bf16.mxu0 0
      %573 = vmatpush1.bf16.msra.mxu0 %v555
      %574 = vmatprep.subr.bf16.mxu0 0
      %575 = vmatpush1.bf16.msra.mxu0 %v556
      %576 = vmatprep.subr.bf16.mxu0 0
      %577 = vmatpush1.bf16.msra.mxu0 %v557
      %578 = vmatprep.subr.bf16.mxu0 0
      %579 = vmatpush1.bf16.msra.mxu0 %v558
      %580 = vmatprep.subr.bf16.mxu0 0
      %581 = vmatpush1.bf16.msra.mxu0 %v559
      %582 = vmatprep.subr.bf16.mxu0 0
      %583 = vmatpush1.bf16.msra.mxu0 %v560
      %584 = vmatprep.subr.bf16.mxu0 0
      %585 = vmatpush1.bf16.msra.mxu0 %v561
      %586 = vmatprep.subr.bf16.mxu0 0
      %587 = vmatpush1.bf16.msra.mxu0 0
      %588 = vmatprep.subr.bf16.mxu0 0
      %589 = vmatpush1.bf16.msra.mxu0 0
      %590 = vmatprep.subr.bf16.mxu0 0
      %591 = vmatpush1.bf16.msra.mxu0 0
      %592 = vmatprep.subr.bf16.mxu0 0
      %593 = vmatpush1.bf16.msra.mxu0 0
      %594 = vmatprep.subr.bf16.mxu0 0
      %595 = vmatpush1.bf16.msra.mxu0 0
      %596 = vmatprep.subr.bf16.mxu0 0
      %597 = vmatpush1.bf16.msra.mxu0 0
      %598 = vmatprep.subr.bf16.mxu0 0
      %599 = vmatpush1.bf16.msra.mxu0 0
      %600 = vmatprep.subr.bf16.mxu0 0
      %601 = vmatpush1.bf16.msra.mxu0 0
      %602 = vmatprep.mubr.bf16.mxu0 0
      %603 = vmatmul.mubr.bf16.gmra.mrb[0].mxu0 %v514
      %v604 = vpop.f32.mrb[0].mxu0
      %v605 = vadd.f32 %v496, %v604
      %v606 = vpop.f32.mrb[0].mxu0
      %v607 = vpop.f32.mrb[0].mxu0
      %v608 = vadd.f32 %v496, %v607
      %v609 = vpop.f32.mrb[0].mxu0
      %610 = vmatprep.mubr.bf16.mxu0 0
      %611 = vmatmul.mubr.bf16.gmra.mrb[0].mxu0 %v515
      %v612 = vpop.f32.mrb[0].mxu0
      %v613 = vadd.f32 %v496, %v612
      %v614 = vpop.f32.mrb[0].mxu0
      %v615 = vpop.f32.mrb[0].mxu0
      %v616 = vadd.f32 %v496, %v615
      %v617 = vpop.f32.mrb[0].mxu0
      %618 = vmatprep.mubr.bf16.mxu0 0
      %619 = vmatmul.mubr.bf16.gmra.mrb[0].mxu0 %v516
      %v620 = vpop.f32.mrb[0].mxu0
      %v621 = vadd.f32 %v496, %v620
      %v622 = vpop.f32.mrb[0].mxu0
      %v623 = vpop.f32.mrb[0].mxu0
      %v624 = vadd.f32 %v496, %v623
      %v625 = vpop.f32.mrb[0].mxu0
      %626 = vmatprep.mubr.bf16.mxu0 0
      %627 = vmatmul.mubr.bf16.gmra.mrb[0].mxu0 %v517
      %v628 = vpop.f32.mrb[0].mxu0
      %v629 = vadd.f32 %v496, %v628
      %v630 = vpop.f32.mrb[0].mxu0
      %v631 = vpop.f32.mrb[0].mxu0
      %v632 = vadd.f32 %v496, %v631
      %v633 = vpop.f32.mrb[0].mxu0
      %634 = vdwg.mxu0
      %v635 = vmax.f32 %v605, 0.0
      %v636 = vmax.f32 %v608, 0.0
      %v637 = vmax.f32 %v613, 0.0
      %v638 = vmax.f32 %v616, 0.0
      %v639 = vmax.f32 %v621, 0.0
      %v640 = vmax.f32 %v624, 0.0
      %v641 = vmax.f32 %v629, 0.0
      %v642 = vmax.f32 %v632, 0.0
      %v643 = vpack.c.bf16 %v636, %v635
      %v644 = vpack.c.bf16 %v638, %v637
      %v645 = vpack.c.bf16 %v640, %v639
      %v646 = vpack.c.bf16 %v642, %v641
      %v647 = vld [vmem:[%s3] sm:$0xf]
      %v648 = vld [vmem:[%s3 + $0x4] sm:$0xf]
      %v649 = vld [vmem:[%s3 + $0x8] sm:$0xf]
      %v650 = vld [vmem:[%s3 + $0xc] sm:$0xf]
      %v651 = vld [vmem:[%s3 + $0x10] sm:$0xf]
      %v652 = vld [vmem:[%s3 + $0x14] sm:$0xf]
      %v653 = vld [vmem:[%s3 + $0x18] sm:$0xf]
      %v654 = vld [vmem:[%s3 + $0x1c] sm:$0xf]
      %v655 = vld [vmem:[%s3 + $0x20] sm:$0xf]
      %v656 = vld [vmem:[%s3 + $0x24] sm:$0xf]
      %v657 = vld [vmem:[%s3 + $0x28] sm:$0xf]
      %v658 = vld [vmem:[%s3 + $0x2c] sm:$0xf]
      %v659 = vld [vmem:[%s3 + $0x30] sm:$0xf]
      %v660 = vld [vmem:[%s3 + $0x34] sm:$0xf]
      %v661 = vld [vmem:[%s3 + $0x38] sm:$0xf]
      %v662 = vld [vmem:[%s3 + $0x3c] sm:$0xf]
      %v663 = vld [vmem:[%s4] sm:$0x1]
      %v665 = vlaneseq
      %v666 = vshrl.u32 %v665, 7
      %v667 = vsub.s32 0, %v666
      %v668 = vrot.slane %v663, %v667
      %v686 = vunpack.c.l.b16 %v647
      %v687 = vunpack.c.l.b16 %v648
      %v688 = vunpack.c.l.b16 %v649
      %v689 = vunpack.c.l.b16 %v650
      %v690 = vunpack.c.l.b16 %v651
      %v691 = vunpack.c.l.b16 %v652
      %v692 = vunpack.c.l.b16 %v653
      %v693 = vunpack.c.l.b16 %v654
      %v694 = vunpack.c.l.b16 %v655
      %v695 = vunpack.c.l.b16 %v656
      %v696 = vunpack.c.l.b16 %v657
      %v697 = vunpack.c.l.b16 %v658
      %v698 = vunpack.c.l.b16 %v659
      %v699 = vunpack.c.l.b16 %v660
      %v700 = vunpack.c.l.b16 %v661
      %v701 = vunpack.c.l.b16 %v662
      %v702 = vpack.c.b16 %v687, %v686
      %v703 = vpack.c.b16 %v689, %v688
      %v704 = vpack.c.b16 %v691, %v690
      %v705 = vpack.c.b16 %v693, %v692
      %v706 = vpack.c.b16 %v695, %v694
      %v707 = vpack.c.b16 %v697, %v696
      %v708 = vpack.c.b16 %v699, %v698
      %v709 = vpack.c.b16 %v701, %v700
      %718 = vmatprep.subr.bf16.mxu0 0
      %719 = vmatpush1.bf16.msra.mxu0 %v702
      %720 = vmatprep.subr.bf16.mxu0 0
      %721 = vmatpush1.bf16.msra.mxu0 %v703
      %722 = vmatprep.subr.bf16.mxu0 0
      %723 = vmatpush1.bf16.msra.mxu0 %v704
      %724 = vmatprep.subr.bf16.mxu0 0
      %725 = vmatpush1.bf16.msra.mxu0 %v705
      %726 = vmatprep.subr.bf16.mxu0 0
      %727 = vmatpush1.bf16.msra.mxu0 %v706
      %728 = vmatprep.subr.bf16.mxu0 0
      %729 = vmatpush1.bf16.msra.mxu0 %v707
      %730 = vmatprep.subr.bf16.mxu0 0
      %731 = vmatpush1.bf16.msra.mxu0 %v708
      %732 = vmatprep.subr.bf16.mxu0 0
      %733 = vmatpush1.bf16.msra.mxu0 %v709
      %734 = vmatprep.subr.bf16.mxu0 0
      %735 = vmatpush1.bf16.msra.mxu0 0
      %736 = vmatprep.subr.bf16.mxu0 0
      %737 = vmatpush1.bf16.msra.mxu0 0
      %738 = vmatprep.subr.bf16.mxu0 0
      %739 = vmatpush1.bf16.msra.mxu0 0
      %740 = vmatprep.subr.bf16.mxu0 0
      %741 = vmatpush1.bf16.msra.mxu0 0
      %742 = vmatprep.subr.bf16.mxu0 0
      %743 = vmatpush1.bf16.msra.mxu0 0
      %744 = vmatprep.subr.bf16.mxu0 0
      %745 = vmatpush1.bf16.msra.mxu0 0
      %746 = vmatprep.subr.bf16.mxu0 0
      %747 = vmatpush1.bf16.msra.mxu0 0
      %748 = vmatprep.subr.bf16.mxu0 0
      %749 = vmatpush1.bf16.msra.mxu0 0
      %750 = vmatprep.mubr.bf16.mxu0 0
      %751 = vmatmul.mubr.bf16.gmra.mrb[0].mxu0 %v643
      %v752 = vpop.f32.mrb[0].mxu0
      %v753 = vadd.f32 %v668, %v752
      %v754 = vpop.f32.mrb[0].mxu0
      %v755 = vpop.f32.mrb[0].mxu0
      %v756 = vadd.f32 %v668, %v755
      %v757 = vpop.f32.mrb[0].mxu0
      %758 = vmatprep.mubr.bf16.mxu0 0
      %759 = vmatmul.mubr.bf16.gmra.mrb[0].mxu0 %v644
      %v760 = vpop.f32.mrb[0].mxu0
      %v761 = vadd.f32 %v668, %v760
      %v762 = vpop.f32.mrb[0].mxu0
      %v763 = vpop.f32.mrb[0].mxu0
      %v764 = vadd.f32 %v668, %v763
      %v765 = vpop.f32.mrb[0].mxu0
      %766 = vmatprep.mubr.bf16.mxu0 0
      %767 = vmatmul.mubr.bf16.gmra.mrb[0].mxu0 %v645
      %v768 = vpop.f32.mrb[0].mxu0
      %v769 = vadd.f32 %v668, %v768
      %v770 = vpop.f32.mrb[0].mxu0
      %v771 = vpop.f32.mrb[0].mxu0
      %v772 = vadd.f32 %v668, %v771
      %v773 = vpop.f32.mrb[0].mxu0
      %774 = vmatprep.mubr.bf16.mxu0 0
      %775 = vmatmul.mubr.bf16.gmra.mrb[0].mxu0 %v646
      %v776 = vpop.f32.mrb[0].mxu0
      %v777 = vadd.f32 %v668, %v776
      %v778 = vpop.f32.mrb[0].mxu0
      %v779 = vpop.f32.mrb[0].mxu0
      %v780 = vadd.f32 %v668, %v779
      %v781 = vpop.f32.mrb[0].mxu0
      %782 = vdwg.mxu0
      %v783 = vmax.f32 %v753, 0.0
      %v784 = vmax.f32 %v756, 0.0
      %v785 = vmax.f32 %v761, 0.0
      %v786 = vmax.f32 %v764, 0.0
      %v787 = vmax.f32 %v769, 0.0
      %v788 = vmax.f32 %v772, 0.0
      %v789 = vmax.f32 %v777, 0.0
      %v790 = vmax.f32 %v780, 0.0
      %791 = vst [vmem:[#allocation2] sm:$0xff] 0.0
      %792 = vst [vmem:[#allocation2 + $0x8] sm:$0xff] 0.0
      %793 = vst [vmem:[#allocation2 + $0x10] sm:$0xff] 0.0
      %794 = vst [vmem:[#allocation2 + $0x18] sm:$0xff] 0.0
      %795 = vst [vmem:[#allocation2 + $0x20] sm:$0xff] 0.0
      %796 = vst [vmem:[#allocation2 + $0x28] sm:$0xff] 0.0
      %797 = vst [vmem:[#allocation2 + $0x30] sm:$0xff] 0.0
      %798 = vst [vmem:[#allocation2 + $0x38] sm:$0xff] 0.0
      %799 = vst [vmem:[#allocation2 + $0x40] sm:$0xff] 0.0
      %800 = vst [vmem:[#allocation2 + $0x48] sm:$0xff] 0.0
      %801 = vst [vmem:[#allocation2 + $0x50] sm:$0xff] 0.0
      %802 = vst [vmem:[#allocation2 + $0x58] sm:$0xff] 0.0
      %803 = vst [vmem:[#allocation2 + $0x60] sm:$0xff] 0.0
      %804 = vst [vmem:[#allocation2 + $0x68] sm:$0xff] 0.0
      %805 = vst [vmem:[#allocation2 + $0x70] sm:$0xff] 0.0
      %806 = vst [vmem:[#allocation2 + $0x78] sm:$0xff] 0.0
      %807 = vst [vmem:[#allocation2 + $0x80] sm:$0xff] 0.0
      %808 = vst [vmem:[#allocation2 + $0x88] sm:$0xff] 0.0
      %809 = vst [vmem:[#allocation2 + $0x90] sm:$0xff] 0.0
      %810 = vst [vmem:[#allocation2 + $0x98] sm:$0xff] 0.0
      %s811 = scalar_lea.vmem [#allocation2], 16
      %812 = vst [vmem:[%s811 + $0x1] sm:$0xff] %v783
      %813 = vst [vmem:[%s811 + $0x11] sm:$0xff] %v784
      %814 = vst [vmem:[%s811 + $0x21] sm:$0xff] %v785
      %815 = vst [vmem:[%s811 + $0x31] sm:$0xff] %v786
      %816 = vst [vmem:[%s811 + $0x41] sm:$0xff] %v787
      %817 = vst [vmem:[%s811 + $0x51] sm:$0xff] %v788
      %818 = vst [vmem:[%s811 + $0x61] sm:$0xff] %v789
      %819 = vst [vmem:[%s811 + $0x71] sm:$0xff] %v790
      %v820 = vld [vmem:[#allocation2] sm:$0xff]
      %v821 = vld [vmem:[#allocation2 + $0x10] sm:$0xff]
      %v822 = vld [vmem:[#allocation2 + $0x20] sm:$0xff]
      %v823 = vld [vmem:[#allocation2 + $0x30] sm:$0xff]
      %v824 = vld [vmem:[#allocation2 + $0x40] sm:$0xff]
      %v825 = vld [vmem:[#allocation2 + $0x50] sm:$0xff]
      %v826 = vld [vmem:[#allocation2 + $0x60] sm:$0xff]
      %v827 = vld [vmem:[#allocation2 + $0x70] sm:$0xff]
      %v828 = vld [vmem:[%s5] sm:$0x1]
      %v829 = vlaneseq
      %v830 = vshrl.u32 %v829, 7
      %v831 = vsub.s32 0, %v830
      %v832 = vrot.slane %v828, %v831
      %v833 = vmul.f32 %v820, %v832
      %v834 = vmul.f32 %v821, %v832
      %v835 = vmul.f32 %v822, %v832
      %v836 = vmul.f32 %v823, %v832
      %v837 = vmul.f32 %v824, %v832
      %v838 = vmul.f32 %v825, %v832
      %v839 = vmul.f32 %v826, %v832
      %v840 = vmul.f32 %v827, %v832
      %v841 = vadd.f32 %v833, 0.0
      %v842 = vadd.f32 %v834, 0.0
      %v843 = vadd.f32 %v835, 0.0
      %v844 = vadd.f32 %v836, 0.0
      %v845 = vadd.f32 %v837, 0.0
      %v846 = vadd.f32 %v838, 0.0
      %v847 = vadd.f32 %v839, 0.0
      %v848 = vadd.f32 %v840, 0.0
      %v849 = vld [vmem:[#allocation2 + $0x1] sm:$0xff]
      %v850 = vld [vmem:[#allocation2 + $0x11] sm:$0xff]
      %v851 = vld [vmem:[#allocation2 + $0x21] sm:$0xff]
      %v852 = vld [vmem:[#allocation2 + $0x31] sm:$0xff]
      %v853 = vld [vmem:[#allocation2 + $0x41] sm:$0xff]
      %v854 = vld [vmem:[#allocation2 + $0x51] sm:$0xff]
      %v855 = vld [vmem:[#allocation2 + $0x61] sm:$0xff]
      %v856 = vld [vmem:[#allocation2 + $0x71] sm:$0xff]
      %v857 = vld [vmem:[%s5 + $0x1] sm:$0x1]
      %v858 = vlaneseq
      %v859 = vshrl.u32 %v858, 7
      %v860 = vsub.s32 0, %v859
      %v861 = vrot.slane %v857, %v860
      %v862 = vmul.f32 %v849, %v861
      %v863 = vmul.f32 %v850, %v861
      %v864 = vmul.f32 %v851, %v861
      %v865 = vmul.f32 %v852, %v861
      %v866 = vmul.f32 %v853, %v861
      %v867 = vmul.f32 %v854, %v861
      %v868 = vmul.f32 %v855, %v861
      %v869 = vmul.f32 %v856, %v861
      %v870 = vadd.f32 %v841, %v862
      %v871 = vadd.f32 %v842, %v863
      %v872 = vadd.f32 %v843, %v864
      %v873 = vadd.f32 %v844, %v865
      %v874 = vadd.f32 %v845, %v866
      %v875 = vadd.f32 %v846, %v867
      %v876 = vadd.f32 %v847, %v868
      %v877 = vadd.f32 %v848, %v869
      %v878 = vld [vmem:[#allocation2 + $0x2] sm:$0xff]
      %v879 = vld [vmem:[#allocation2 + $0x12] sm:$0xff]
      %v880 = vld [vmem:[#allocation2 + $0x22] sm:$0xff]
      %v881 = vld [vmem:[#allocation2 + $0x32] sm:$0xff]
      %v882 = vld [vmem:[#allocation2 + $0x42] sm:$0xff]
      %v883 = vld [vmem:[#allocation2 + $0x52] sm:$0xff]
      %v884 = vld [vmem:[#allocation2 + $0x62] sm:$0xff]
      %v885 = vld [vmem:[#allocation2 + $0x72] sm:$0xff]
      %v886 = vld [vmem:[%s5 + $0x2] sm:$0x1]
      %v887 = vlaneseq
      %v888 = vshrl.u32 %v887, 7
      %v889 = vsub.s32 0, %v888
      %v890 = vrot.slane %v886, %v889
      %v891 = vmul.f32 %v878, %v890
      %v892 = vmul.f32 %v879, %v890
      %v893 = vmul.f32 %v880, %v890
      %v894 = vmul.f32 %v881, %v890
      %v895 = vmul.f32 %v882, %v890
      %v896 = vmul.f32 %v883, %v890
      %v897 = vmul.f32 %v884, %v890
      %v898 = vmul.f32 %v885, %v890
      %v899 = vadd.f32 %v870, %v891
      %v900 = vadd.f32 %v871, %v892
      %v901 = vadd.f32 %v872, %v893
      %v902 = vadd.f32 %v873, %v894
      %v903 = vadd.f32 %v874, %v895
      %v904 = vadd.f32 %v875, %v896
      %v905 = vadd.f32 %v876, %v897
      %v906 = vadd.f32 %v877, %v898
      %v907 = vld [vmem:[%s811] sm:$0xff]
      %v908 = vld [vmem:[%s811 + $0x10] sm:$0xff]
      %v909 = vld [vmem:[%s811 + $0x20] sm:$0xff]
      %v910 = vld [vmem:[%s811 + $0x30] sm:$0xff]
      %v911 = vld [vmem:[%s811 + $0x40] sm:$0xff]
      %v912 = vld [vmem:[%s811 + $0x50] sm:$0xff]
      %v913 = vld [vmem:[%s811 + $0x60] sm:$0xff]
      %v914 = vld [vmem:[%s811 + $0x70] sm:$0xff]
      %v915 = vld [vmem:[%s5 + $0x3] sm:$0x1]
      %v916 = vlaneseq
      %v917 = vshrl.u32 %v916, 7
      %v918 = vsub.s32 0, %v917
      %v919 = vrot.slane %v915, %v918
      %v920 = vmul.f32 %v907, %v919
      %v921 = vmul.f32 %v908, %v919
      %v922 = vmul.f32 %v909, %v919
      %v923 = vmul.f32 %v910, %v919
      %v924 = vmul.f32 %v911, %v919
      %v925 = vmul.f32 %v912, %v919
      %v926 = vmul.f32 %v913, %v919
      %v927 = vmul.f32 %v914, %v919
      %v928 = vadd.f32 %v899, %v920
      %v929 = vadd.f32 %v900, %v921
      %v930 = vadd.f32 %v901, %v922
      %v931 = vadd.f32 %v902, %v923
      %v932 = vadd.f32 %v903, %v924
      %v933 = vadd.f32 %v904, %v925
      %v934 = vadd.f32 %v905, %v926
      %v935 = vadd.f32 %v906, %v927
      %v936 = vld [vmem:[%s811 + $0x1] sm:$0xff]
      %v937 = vld [vmem:[%s811 + $0x11] sm:$0xff]
      %v938 = vld [vmem:[%s811 + $0x21] sm:$0xff]
      %v939 = vld [vmem:[%s811 + $0x31] sm:$0xff]
      %v940 = vld [vmem:[%s811 + $0x41] sm:$0xff]
      %v941 = vld [vmem:[%s811 + $0x51] sm:$0xff]
      %v942 = vld [vmem:[%s811 + $0x61] sm:$0xff]
      %v943 = vld [vmem:[%s811 + $0x71] sm:$0xff]
      %v944 = vld [vmem:[%s5 + $0x4] sm:$0x1]
      %v945 = vlaneseq
      %v946 = vshrl.u32 %v945, 7
      %v947 = vsub.s32 0, %v946
      %v948 = vrot.slane %v944, %v947
      %v949 = vmul.f32 %v936, %v948
      %v950 = vmul.f32 %v937, %v948
      %v951 = vmul.f32 %v938, %v948
      %v952 = vmul.f32 %v939, %v948
      %v953 = vmul.f32 %v940, %v948
      %v954 = vmul.f32 %v941, %v948
      %v955 = vmul.f32 %v942, %v948
      %v956 = vmul.f32 %v943, %v948
      %v957 = vadd.f32 %v928, %v949
      %v958 = vadd.f32 %v929, %v950
      %v959 = vadd.f32 %v930, %v951
      %v960 = vadd.f32 %v931, %v952
      %v961 = vadd.f32 %v932, %v953
      %v962 = vadd.f32 %v933, %v954
      %v963 = vadd.f32 %v934, %v955
      %v964 = vadd.f32 %v935, %v956
      %v965 = vld [vmem:[%s811 + $0x2] sm:$0xff]
      %v966 = vld [vmem:[%s811 + $0x12] sm:$0xff]
      %v967 = vld [vmem:[%s811 + $0x22] sm:$0xff]
      %v968 = vld [vmem:[%s811 + $0x32] sm:$0xff]
      %v969 = vld [vmem:[%s811 + $0x42] sm:$0xff]
      %v970 = vld [vmem:[%s811 + $0x52] sm:$0xff]
      %v971 = vld [vmem:[%s811 + $0x62] sm:$0xff]
      %v972 = vld [vmem:[%s811 + $0x72] sm:$0xff]
      %v973 = vld [vmem:[%s5 + $0x5] sm:$0x1]
      %v974 = vlaneseq
      %v975 = vshrl.u32 %v974, 7
      %v976 = vsub.s32 0, %v975
      %v977 = vrot.slane %v973, %v976
      %v978 = vmul.f32 %v965, %v977
      %v979 = vmul.f32 %v966, %v977
      %v980 = vmul.f32 %v967, %v977
      %v981 = vmul.f32 %v968, %v977
      %v982 = vmul.f32 %v969, %v977
      %v983 = vmul.f32 %v970, %v977
      %v984 = vmul.f32 %v971, %v977
      %v985 = vmul.f32 %v972, %v977
      %v986 = vadd.f32 %v957, %v978
      %v987 = vadd.f32 %v958, %v979
      %v988 = vadd.f32 %v959, %v980
      %v989 = vadd.f32 %v960, %v981
      %v990 = vadd.f32 %v961, %v982
      %v991 = vadd.f32 %v962, %v983
      %v992 = vadd.f32 %v963, %v984
      %v993 = vadd.f32 %v964, %v985
      %s994 = scalar_lea.vmem [#allocation2], 32
      %v995 = vld [vmem:[%s994] sm:$0xff]
      %v996 = vld [vmem:[%s994 + $0x10] sm:$0xff]
      %v997 = vld [vmem:[%s994 + $0x20] sm:$0xff]
      %v998 = vld [vmem:[%s994 + $0x30] sm:$0xff]
      %v999 = vld [vmem:[%s994 + $0x40] sm:$0xff]
      %v1000 = vld [vmem:[%s994 + $0x50] sm:$0xff]
      %v1001 = vld [vmem:[%s994 + $0x60] sm:$0xff]
      %v1002 = vld [vmem:[%s994 + $0x70] sm:$0xff]
      %v1003 = vld [vmem:[%s5 + $0x6] sm:$0x1]
      %v1004 = vlaneseq
      %v1005 = vshrl.u32 %v1004, 7
      %v1006 = vsub.s32 0, %v1005
      %v1007 = vrot.slane %v1003, %v1006
      %v1008 = vmul.f32 %v995, %v1007
      %v1009 = vmul.f32 %v996, %v1007
      %v1010 = vmul.f32 %v997, %v1007
      %v1011 = vmul.f32 %v998, %v1007
      %v1012 = vmul.f32 %v999, %v1007
      %v1013 = vmul.f32 %v1000, %v1007
      %v1014 = vmul.f32 %v1001, %v1007
      %v1015 = vmul.f32 %v1002, %v1007
      %v1016 = vadd.f32 %v986, %v1008
      %v1017 = vadd.f32 %v987, %v1009
      %v1018 = vadd.f32 %v988, %v1010
      %v1019 = vadd.f32 %v989, %v1011
      %v1020 = vadd.f32 %v990, %v1012
      %v1021 = vadd.f32 %v991, %v1013
      %v1022 = vadd.f32 %v992, %v1014
      %v1023 = vadd.f32 %v993, %v1015
      %v1024 = vld [vmem:[%s994 + $0x1] sm:$0xff]
      %v1025 = vld [vmem:[%s994 + $0x11] sm:$0xff]
      %v1026 = vld [vmem:[%s994 + $0x21] sm:$0xff]
      %v1027 = vld [vmem:[%s994 + $0x31] sm:$0xff]
      %v1028 = vld [vmem:[%s994 + $0x41] sm:$0xff]
      %v1029 = vld [vmem:[%s994 + $0x51] sm:$0xff]
      %v1030 = vld [vmem:[%s994 + $0x61] sm:$0xff]
      %v1031 = vld [vmem:[%s994 + $0x71] sm:$0xff]
      %v1032 = vld [vmem:[%s5 + $0x7] sm:$0x1]
      %v1033 = vlaneseq
      %v1034 = vshrl.u32 %v1033, 7
      %v1035 = vsub.s32 0, %v1034
      %v1036 = vrot.slane %v1032, %v1035
      %v1037 = vmul.f32 %v1024, %v1036
      %v1038 = vmul.f32 %v1025, %v1036
      %v1039 = vmul.f32 %v1026, %v1036
      %v1040 = vmul.f32 %v1027, %v1036
      %v1041 = vmul.f32 %v1028, %v1036
      %v1042 = vmul.f32 %v1029, %v1036
      %v1043 = vmul.f32 %v1030, %v1036
      %v1044 = vmul.f32 %v1031, %v1036
      %v1045 = vadd.f32 %v1016, %v1037
      %v1046 = vadd.f32 %v1017, %v1038
      %v1047 = vadd.f32 %v1018, %v1039
      %v1048 = vadd.f32 %v1019, %v1040
      %v1049 = vadd.f32 %v1020, %v1041
      %v1050 = vadd.f32 %v1021, %v1042
      %v1051 = vadd.f32 %v1022, %v1043
      %v1052 = vadd.f32 %v1023, %v1044
      %v1053 = vld [vmem:[%s994 + $0x2] sm:$0xff]
      %v1054 = vld [vmem:[%s994 + $0x12] sm:$0xff]
      %v1055 = vld [vmem:[%s994 + $0x22] sm:$0xff]
      %v1056 = vld [vmem:[%s994 + $0x32] sm:$0xff]
      %v1057 = vld [vmem:[%s994 + $0x42] sm:$0xff]
      %v1058 = vld [vmem:[%s994 + $0x52] sm:$0xff]
      %v1059 = vld [vmem:[%s994 + $0x62] sm:$0xff]
      %v1060 = vld [vmem:[%s994 + $0x72] sm:$0xff]
      %v1061 = vld [vmem:[%s5 + $0x8] sm:$0x1]
      %v1062 = vlaneseq
      %v1063 = vshrl.u32 %v1062, 7
      %v1064 = vsub.s32 0, %v1063
      %v1065 = vrot.slane %v1061, %v1064
      %v1066 = vmul.f32 %v1053, %v1065
      %v1067 = vmul.f32 %v1054, %v1065
      %v1068 = vmul.f32 %v1055, %v1065
      %v1069 = vmul.f32 %v1056, %v1065
      %v1070 = vmul.f32 %v1057, %v1065
      %v1071 = vmul.f32 %v1058, %v1065
      %v1072 = vmul.f32 %v1059, %v1065
      %v1073 = vmul.f32 %v1060, %v1065
      %v1074 = vadd.f32 %v1045, %v1066
      %v1075 = vadd.f32 %v1046, %v1067
      %v1076 = vadd.f32 %v1047, %v1068
      %v1077 = vadd.f32 %v1048, %v1069
      %v1078 = vadd.f32 %v1049, %v1070
      %v1079 = vadd.f32 %v1050, %v1071
      %v1080 = vadd.f32 %v1051, %v1072
      %v1081 = vadd.f32 %v1052, %v1073
      %v1082 = vld [vmem:[%s6] sm:$0x1]
      %v1084 = vlaneseq
      %v1085 = vshrl.u32 %v1084, 7
      %v1086 = vsub.s32 0, %v1085
      %v1087 = vrot.slane %v1082, %v1086
      %v1089 = vadd.f32 %v1074, %v1087
      %v1090 = vadd.f32 %v1075, %v1087
      %v1091 = vadd.f32 %v1076, %v1087
      %v1092 = vadd.f32 %v1077, %v1087
      %v1093 = vadd.f32 %v1078, %v1087
      %v1094 = vadd.f32 %v1079, %v1087
      %v1095 = vadd.f32 %v1080, %v1087
      %v1096 = vadd.f32 %v1081, %v1087
      %v1097 = vpack.c.bf16 %v1090, %v1089
      %v1098 = vpack.c.bf16 %v1092, %v1091
      %v1099 = vpack.c.bf16 %v1094, %v1093
      %v1100 = vpack.c.bf16 %v1096, %v1095
      %v1101 = vld [vmem:[%s7] sm:$0xf]
      %v1102 = vld [vmem:[%s7 + $0x4] sm:$0xf]
      %v1103 = vld [vmem:[%s7 + $0x8] sm:$0xf]
      %v1104 = vld [vmem:[%s7 + $0xc] sm:$0xf]
      %v1105 = vld [vmem:[%s7 + $0x10] sm:$0xf]
      %v1106 = vld [vmem:[%s7 + $0x14] sm:$0xf]
      %v1107 = vld [vmem:[%s7 + $0x18] sm:$0xf]
      %v1108 = vld [vmem:[%s7 + $0x1c] sm:$0xf]
      %v1109 = vld [vmem:[%s7 + $0x20] sm:$0xf]
      %v1110 = vld [vmem:[%s7 + $0x24] sm:$0xf]
      %v1111 = vld [vmem:[%s7 + $0x28] sm:$0xf]
      %v1112 = vld [vmem:[%s7 + $0x2c] sm:$0xf]
      %v1113 = vld [vmem:[%s7 + $0x30] sm:$0xf]
      %v1114 = vld [vmem:[%s7 + $0x34] sm:$0xf]
      %v1115 = vld [vmem:[%s7 + $0x38] sm:$0xf]
      %v1116 = vld [vmem:[%s7 + $0x3c] sm:$0xf]
      %v1117 = vld [vmem:[%s8] sm:$0x1]
      %v1119 = vlaneseq
      %v1120 = vshrl.u32 %v1119, 7
      %v1121 = vsub.s32 0, %v1120
      %v1122 = vrot.slane %v1117, %v1121
      %v1140 = vunpack.c.l.b16 %v1101
      %v1141 = vunpack.c.l.b16 %v1102
      %v1142 = vunpack.c.l.b16 %v1103
      %v1143 = vunpack.c.l.b16 %v1104
      %v1144 = vunpack.c.l.b16 %v1105
      %v1145 = vunpack.c.l.b16 %v1106
      %v1146 = vunpack.c.l.b16 %v1107
      %v1147 = vunpack.c.l.b16 %v1108
      %v1148 = vunpack.c.l.b16 %v1109
      %v1149 = vunpack.c.l.b16 %v1110
      %v1150 = vunpack.c.l.b16 %v1111
      %v1151 = vunpack.c.l.b16 %v1112
      %v1152 = vunpack.c.l.b16 %v1113
      %v1153 = vunpack.c.l.b16 %v1114
      %v1154 = vunpack.c.l.b16 %v1115
      %v1155 = vunpack.c.l.b16 %v1116
      %v1156 = vpack.c.b16 %v1141, %v1140
      %v1157 = vpack.c.b16 %v1143, %v1142
      %v1158 = vpack.c.b16 %v1145, %v1144
      %v1159 = vpack.c.b16 %v1147, %v1146
      %v1160 = vpack.c.b16 %v1149, %v1148
      %v1161 = vpack.c.b16 %v1151, %v1150
      %v1162 = vpack.c.b16 %v1153, %v1152
      %v1163 = vpack.c.b16 %v1155, %v1154
      %1172 = vmatprep.subr.bf16.mxu0 0
      %1173 = vmatpush1.bf16.msra.mxu0 %v1156
      %1174 = vmatprep.subr.bf16.mxu0 0
      %1175 = vmatpush1.bf16.msra.mxu0 %v1157
      %1176 = vmatprep.subr.bf16.mxu0 0
      %1177 = vmatpush1.bf16.msra.mxu0 %v1158
      %1178 = vmatprep.subr.bf16.mxu0 0
      %1179 = vmatpush1.bf16.msra.mxu0 %v1159
      %1180 = vmatprep.subr.bf16.mxu0 0
      %1181 = vmatpush1.bf16.msra.mxu0 %v1160
      %1182 = vmatprep.subr.bf16.mxu0 0
      %1183 = vmatpush1.bf16.msra.mxu0 %v1161
      %1184 = vmatprep.subr.bf16.mxu0 0
      %1185 = vmatpush1.bf16.msra.mxu0 %v1162
      %1186 = vmatprep.subr.bf16.mxu0 0
      %1187 = vmatpush1.bf16.msra.mxu0 %v1163
      %1188 = vmatprep.subr.bf16.mxu0 0
      %1189 = vmatpush1.bf16.msra.mxu0 0
      %1190 = vmatprep.subr.bf16.mxu0 0
      %1191 = vmatpush1.bf16.msra.mxu0 0
      %1192 = vmatprep.subr.bf16.mxu0 0
      %1193 = vmatpush1.bf16.msra.mxu0 0
      %1194 = vmatprep.subr.bf16.mxu0 0
      %1195 = vmatpush1.bf16.msra.mxu0 0
      %1196 = vmatprep.subr.bf16.mxu0 0
      %1197 = vmatpush1.bf16.msra.mxu0 0
      %1198 = vmatprep.subr.bf16.mxu0 0
      %1199 = vmatpush1.bf16.msra.mxu0 0
      %1200 = vmatprep.subr.bf16.mxu0 0
      %1201 = vmatpush1.bf16.msra.mxu0 0
      %1202 = vmatprep.subr.bf16.mxu0 0
      %1203 = vmatpush1.bf16.msra.mxu0 0
      %1204 = vmatprep.mubr.bf16.mxu0 0
      %1205 = vmatmul.mubr.bf16.gmra.mrb[0].mxu0 %v1097
      %v1206 = vpop.f32.mrb[0].mxu0
      %v1207 = vadd.f32 %v1122, %v1206
      %v1208 = vpop.f32.mrb[0].mxu0
      %v1209 = vpop.f32.mrb[0].mxu0
      %v1210 = vadd.f32 %v1122, %v1209
      %v1211 = vpop.f32.mrb[0].mxu0
      %1212 = vmatprep.mubr.bf16.mxu0 0
      %1213 = vmatmul.mubr.bf16.gmra.mrb[0].mxu0 %v1098
      %v1214 = vpop.f32.mrb[0].mxu0
      %v1215 = vadd.f32 %v1122, %v1214
      %v1216 = vpop.f32.mrb[0].mxu0
      %v1217 = vpop.f32.mrb[0].mxu0
      %v1218 = vadd.f32 %v1122, %v1217
      %v1219 = vpop.f32.mrb[0].mxu0
      %1220 = vmatprep.mubr.bf16.mxu0 0
      %1221 = vmatmul.mubr.bf16.gmra.mrb[0].mxu0 %v1099
      %v1222 = vpop.f32.mrb[0].mxu0
      %v1223 = vadd.f32 %v1122, %v1222
      %v1224 = vpop.f32.mrb[0].mxu0
      %v1225 = vpop.f32.mrb[0].mxu0
      %v1226 = vadd.f32 %v1122, %v1225
      %v1227 = vpop.f32.mrb[0].mxu0
      %1228 = vmatprep.mubr.bf16.mxu0 0
      %1229 = vmatmul.mubr.bf16.gmra.mrb[0].mxu0 %v1100
      %v1230 = vpop.f32.mrb[0].mxu0
      %v1231 = vadd.f32 %v1122, %v1230
      %v1232 = vpop.f32.mrb[0].mxu0
      %v1233 = vpop.f32.mrb[0].mxu0
      %v1234 = vadd.f32 %v1122, %v1233
      %v1235 = vpop.f32.mrb[0].mxu0
      %1236 = vdwg.mxu0
      %v1237 = vmax.f32 %v1207, 0.0
      %v1238 = vmax.f32 %v1210, 0.0
      %v1239 = vmax.f32 %v1215, 0.0
      %v1240 = vmax.f32 %v1218, 0.0
      %v1241 = vmax.f32 %v1223, 0.0
      %v1242 = vmax.f32 %v1226, 0.0
      %v1243 = vmax.f32 %v1231, 0.0
      %v1244 = vmax.f32 %v1234, 0.0
      %v1245 = vld [vmem:[%s9] sm:$0xf]
      %v1246 = vld [vmem:[%s9 + $0x4] sm:$0xf]
      %v1247 = vld [vmem:[%s9 + $0x8] sm:$0xf]
      %v1248 = vld [vmem:[%s9 + $0xc] sm:$0xf]
      %v1249 = vld [vmem:[%s9 + $0x10] sm:$0xf]
      %v1250 = vld [vmem:[%s9 + $0x14] sm:$0xf]
      %v1251 = vld [vmem:[%s9 + $0x18] sm:$0xf]
      %v1252 = vld [vmem:[%s9 + $0x1c] sm:$0xf]
      %v1253 = vld [vmem:[%s9 + $0x20] sm:$0xf]
      %v1254 = vld [vmem:[%s9 + $0x24] sm:$0xf]
      %v1255 = vld [vmem:[%s9 + $0x28] sm:$0xf]
      %v1256 = vld [vmem:[%s9 + $0x2c] sm:$0xf]
      %v1257 = vld [vmem:[%s9 + $0x30] sm:$0xf]
      %v1258 = vld [vmem:[%s9 + $0x34] sm:$0xf]
      %v1259 = vld [vmem:[%s9 + $0x38] sm:$0xf]
      %v1260 = vld [vmem:[%s9 + $0x3c] sm:$0xf]
      %v1261 = vpack.c.bf16 %v1238, %v1237
      %v1262 = vpack.c.bf16 %v1240, %v1239
      %v1263 = vpack.c.bf16 %v1242, %v1241
      %v1264 = vpack.c.bf16 %v1244, %v1243
      %v1265 = vld [vmem:[%s10] sm:$0xf]
      %v1266 = vld [vmem:[%s10 + $0x4] sm:$0xf]
      %v1267 = vld [vmem:[%s10 + $0x8] sm:$0xf]
      %v1268 = vld [vmem:[%s10 + $0xc] sm:$0xf]
      %v1269 = vld [vmem:[%s10 + $0x10] sm:$0xf]
      %v1270 = vld [vmem:[%s10 + $0x14] sm:$0xf]
      %v1271 = vld [vmem:[%s10 + $0x18] sm:$0xf]
      %v1272 = vld [vmem:[%s10 + $0x1c] sm:$0xf]
      %v1273 = vld [vmem:[%s10 + $0x20] sm:$0xf]
      %v1274 = vld [vmem:[%s10 + $0x24] sm:$0xf]
      %v1275 = vld [vmem:[%s10 + $0x28] sm:$0xf]
      %v1276 = vld [vmem:[%s10 + $0x2c] sm:$0xf]
      %v1277 = vld [vmem:[%s10 + $0x30] sm:$0xf]
      %v1278 = vld [vmem:[%s10 + $0x34] sm:$0xf]
      %v1279 = vld [vmem:[%s10 + $0x38] sm:$0xf]
      %v1280 = vld [vmem:[%s10 + $0x3c] sm:$0xf]
      %v1297 = vunpack.c.l.b16 %v1265
      %v1298 = vunpack.c.l.b16 %v1266
      %v1299 = vunpack.c.l.b16 %v1267
      %v1300 = vunpack.c.l.b16 %v1268
      %v1301 = vunpack.c.l.b16 %v1269
      %v1302 = vunpack.c.l.b16 %v1270
      %v1303 = vunpack.c.l.b16 %v1271
      %v1304 = vunpack.c.l.b16 %v1272
      %v1305 = vunpack.c.l.b16 %v1273
      %v1306 = vunpack.c.l.b16 %v1274
      %v1307 = vunpack.c.l.b16 %v1275
      %v1308 = vunpack.c.l.b16 %v1276
      %v1309 = vunpack.c.l.b16 %v1277
      %v1310 = vunpack.c.l.b16 %v1278
      %v1311 = vunpack.c.l.b16 %v1279
      %v1312 = vunpack.c.l.b16 %v1280
      %v1313 = vpack.c.b16 %v1298, %v1297
      %v1314 = vpack.c.b16 %v1300, %v1299
      %v1315 = vpack.c.b16 %v1302, %v1301
      %v1316 = vpack.c.b16 %v1304, %v1303
      %v1317 = vpack.c.b16 %v1306, %v1305
      %v1318 = vpack.c.b16 %v1308, %v1307
      %v1319 = vpack.c.b16 %v1310, %v1309
      %v1320 = vpack.c.b16 %v1312, %v1311
      %1329 = vmatprep.subr.bf16.mxu0 0
      %1330 = vmatpush1.bf16.msra.mxu0 %v1313
      %1331 = vmatprep.subr.bf16.mxu0 0
      %1332 = vmatpush1.bf16.msra.mxu0 %v1314
      %1333 = vmatprep.subr.bf16.mxu0 0
      %1334 = vmatpush1.bf16.msra.mxu0 %v1315
      %1335 = vmatprep.subr.bf16.mxu0 0
      %1336 = vmatpush1.bf16.msra.mxu0 %v1316
      %1337 = vmatprep.subr.bf16.mxu0 0
      %1338 = vmatpush1.bf16.msra.mxu0 %v1317
      %1339 = vmatprep.subr.bf16.mxu0 0
      %1340 = vmatpush1.bf16.msra.mxu0 %v1318
      %1341 = vmatprep.subr.bf16.mxu0 0
      %1342 = vmatpush1.bf16.msra.mxu0 %v1319
      %1343 = vmatprep.subr.bf16.mxu0 0
      %1344 = vmatpush1.bf16.msra.mxu0 %v1320
      %1345 = vmatprep.subr.bf16.mxu0 0
      %1346 = vmatpush1.bf16.msra.mxu0 0
      %1347 = vmatprep.subr.bf16.mxu0 0
      %1348 = vmatpush1.bf16.msra.mxu0 0
      %1349 = vmatprep.subr.bf16.mxu0 0
      %1350 = vmatpush1.bf16.msra.mxu0 0
      %1351 = vmatprep.subr.bf16.mxu0 0
      %1352 = vmatpush1.bf16.msra.mxu0 0
      %1353 = vmatprep.subr.bf16.mxu0 0
      %1354 = vmatpush1.bf16.msra.mxu0 0
      %1355 = vmatprep.subr.bf16.mxu0 0
      %1356 = vmatpush1.bf16.msra.mxu0 0
      %1357 = vmatprep.subr.bf16.mxu0 0
      %1358 = vmatpush1.bf16.msra.mxu0 0
      %1359 = vmatprep.subr.bf16.mxu0 0
      %1360 = vmatpush1.bf16.msra.mxu0 0
      %1361 = vmatprep.mubr.bf16.mxu0 0
      %1362 = vmatmul.mubr.bf16.gmra.mrb[0].mxu0 %v1261
      %v1363 = vpop.f32.mrb[0].mxu0
      %v1364 = vadd.f32 0.0, %v1363
      %v1365 = vpop.f32.mrb[0].mxu0
      %v1366 = vpop.f32.mrb[0].mxu0
      %v1367 = vadd.f32 0.0, %v1366
      %v1368 = vpop.f32.mrb[0].mxu0
      %1369 = vmatprep.mubr.bf16.mxu0 0
      %1370 = vmatmul.mubr.bf16.gmra.mrb[0].mxu0 %v1262
      %v1371 = vpop.f32.mrb[0].mxu0
      %v1372 = vadd.f32 0.0, %v1371
      %v1373 = vpop.f32.mrb[0].mxu0
      %v1374 = vpop.f32.mrb[0].mxu0
      %v1375 = vadd.f32 0.0, %v1374
      %v1376 = vpop.f32.mrb[0].mxu0
      %1377 = vmatprep.mubr.bf16.mxu0 0
      %1378 = vmatmul.mubr.bf16.gmra.mrb[0].mxu0 %v1263
      %v1379 = vpop.f32.mrb[0].mxu0
      %v1380 = vadd.f32 0.0, %v1379
      %v1381 = vpop.f32.mrb[0].mxu0
      %v1382 = vpop.f32.mrb[0].mxu0
      %v1383 = vadd.f32 0.0, %v1382
      %v1384 = vpop.f32.mrb[0].mxu0
      %1385 = vmatprep.mubr.bf16.mxu0 0
      %1386 = vmatmul.mubr.bf16.gmra.mrb[0].mxu0 %v1264
      %v1387 = vpop.f32.mrb[0].mxu0
      %v1388 = vadd.f32 0.0, %v1387
      %v1389 = vpop.f32.mrb[0].mxu0
      %v1390 = vpop.f32.mrb[0].mxu0
      %v1391 = vadd.f32 0.0, %v1390
      %v1392 = vpop.f32.mrb[0].mxu0
      %1393 = vdwg.mxu0
      %v1410 = vunpack.c.l.b16 %v1245
      %v1411 = vunpack.c.l.b16 %v1246
      %v1412 = vunpack.c.l.b16 %v1247
      %v1413 = vunpack.c.l.b16 %v1248
      %v1414 = vunpack.c.l.b16 %v1249
      %v1415 = vunpack.c.l.b16 %v1250
      %v1416 = vunpack.c.l.b16 %v1251
      %v1417 = vunpack.c.l.b16 %v1252
      %v1418 = vunpack.c.l.b16 %v1253
      %v1419 = vunpack.c.l.b16 %v1254
      %v1420 = vunpack.c.l.b16 %v1255
      %v1421 = vunpack.c.l.b16 %v1256
      %v1422 = vunpack.c.l.b16 %v1257
      %v1423 = vunpack.c.l.b16 %v1258
      %v1424 = vunpack.c.l.b16 %v1259
      %v1425 = vunpack.c.l.b16 %v1260
      %v1426 = vpack.c.b16 %v1411, %v1410
      %v1427 = vpack.c.b16 %v1413, %v1412
      %v1428 = vpack.c.b16 %v1415, %v1414
      %v1429 = vpack.c.b16 %v1417, %v1416
      %v1430 = vpack.c.b16 %v1419, %v1418
      %v1431 = vpack.c.b16 %v1421, %v1420
      %v1432 = vpack.c.b16 %v1423, %v1422
      %v1433 = vpack.c.b16 %v1425, %v1424
      %1442 = vmatprep.subr.bf16.mxu0 0
      %1443 = vmatpush1.bf16.msra.mxu0 %v1426
      %1444 = vmatprep.subr.bf16.mxu0 0
      %1445 = vmatpush1.bf16.msra.mxu0 %v1427
      %1446 = vmatprep.subr.bf16.mxu0 0
      %1447 = vmatpush1.bf16.msra.mxu0 %v1428
      %1448 = vmatprep.subr.bf16.mxu0 0
      %1449 = vmatpush1.bf16.msra.mxu0 %v1429
      %1450 = vmatprep.subr.bf16.mxu0 0
      %1451 = vmatpush1.bf16.msra.mxu0 %v1430
      %1452 = vmatprep.subr.bf16.mxu0 0
      %1453 = vmatpush1.bf16.msra.mxu0 %v1431
      %1454 = vmatprep.subr.bf16.mxu0 0
      %1455 = vmatpush1.bf16.msra.mxu0 %v1432
      %1456 = vmatprep.subr.bf16.mxu0 0
      %1457 = vmatpush1.bf16.msra.mxu0 %v1433
      %1458 = vmatprep.subr.bf16.mxu0 0
      %1459 = vmatpush1.bf16.msra.mxu0 0
      %1460 = vmatprep.subr.bf16.mxu0 0
      %1461 = vmatpush1.bf16.msra.mxu0 0
      %1462 = vmatprep.subr.bf16.mxu0 0
      %1463 = vmatpush1.bf16.msra.mxu0 0
      %1464 = vmatprep.subr.bf16.mxu0 0
      %1465 = vmatpush1.bf16.msra.mxu0 0
      %1466 = vmatprep.subr.bf16.mxu0 0
      %1467 = vmatpush1.bf16.msra.mxu0 0
      %1468 = vmatprep.subr.bf16.mxu0 0
      %1469 = vmatpush1.bf16.msra.mxu0 0
      %1470 = vmatprep.subr.bf16.mxu0 0
      %1471 = vmatpush1.bf16.msra.mxu0 0
      %1472 = vmatprep.subr.bf16.mxu0 0
      %1473 = vmatpush1.bf16.msra.mxu0 0
      %1474 = vmatprep.mubr.bf16.mxu0 0
      %1475 = vmatmul.mubr.bf16.gmra.mrb[0].mxu0 %v643
      %v1476 = vpop.f32.mrb[0].mxu0
      %v1477 = vadd.f32 %v1364, %v1476
      %v1478 = vpop.f32.mrb[0].mxu0
      %v1479 = vpop.f32.mrb[0].mxu0
      %v1480 = vadd.f32 %v1367, %v1479
      %v1481 = vpop.f32.mrb[0].mxu0
      %1482 = vmatprep.mubr.bf16.mxu0 0
      %1483 = vmatmul.mubr.bf16.gmra.mrb[0].mxu0 %v644
      %v1484 = vpop.f32.mrb[0].mxu0
      %v1485 = vadd.f32 %v1372, %v1484
      %v1486 = vpop.f32.mrb[0].mxu0
      %v1487 = vpop.f32.mrb[0].mxu0
      %v1488 = vadd.f32 %v1375, %v1487
      %v1489 = vpop.f32.mrb[0].mxu0
      %1490 = vmatprep.mubr.bf16.mxu0 0
      %1491 = vmatmul.mubr.bf16.gmra.mrb[0].mxu0 %v645
      %v1492 = vpop.f32.mrb[0].mxu0
      %v1493 = vadd.f32 %v1380, %v1492
      %v1494 = vpop.f32.mrb[0].mxu0
      %v1495 = vpop.f32.mrb[0].mxu0
      %v1496 = vadd.f32 %v1383, %v1495
      %v1497 = vpop.f32.mrb[0].mxu0
      %1498 = vmatprep.mubr.bf16.mxu0 0
      %1499 = vmatmul.mubr.bf16.gmra.mrb[0].mxu0 %v646
      %v1500 = vpop.f32.mrb[0].mxu0
      %v1501 = vadd.f32 %v1388, %v1500
      %v1502 = vpop.f32.mrb[0].mxu0
      %v1503 = vpop.f32.mrb[0].mxu0
      %v1504 = vadd.f32 %v1391, %v1503
      %v1505 = vpop.f32.mrb[0].mxu0
      %1506 = vdwg.mxu0
      %v1507 = vld [vmem:[%s11] sm:$0x1]
      %v1509 = vlaneseq
      %v1510 = vshrl.u32 %v1509, 7
      %v1511 = vsub.s32 0, %v1510
      %v1512 = vrot.slane %v1507, %v1511
      %v1514 = vadd.f32 %v1477, %v1512
      %v1515 = vadd.f32 %v1480, %v1512
      %v1516 = vadd.f32 %v1485, %v1512
      %v1517 = vadd.f32 %v1488, %v1512
      %v1518 = vadd.f32 %v1493, %v1512
      %v1519 = vadd.f32 %v1496, %v1512
      %v1520 = vadd.f32 %v1501, %v1512
      %v1521 = vadd.f32 %v1504, %v1512
      %v1522 = vmax.f32 %v1514, 0.0
      %v1523 = vmax.f32 %v1515, 0.0
      %v1524 = vmax.f32 %v1516, 0.0
      %v1525 = vmax.f32 %v1517, 0.0
      %v1526 = vmax.f32 %v1518, 0.0
      %v1527 = vmax.f32 %v1519, 0.0
      %v1528 = vmax.f32 %v1520, 0.0
      %v1529 = vmax.f32 %v1521, 0.0
      %v1530 = vadd.f32 %v1522, %v1523
      %v1531 = vadd.f32 %v1530, %v1524
      %v1532 = vadd.f32 %v1531, %v1525
      %v1533 = vadd.f32 %v1532, %v1526
      %v1534 = vadd.f32 %v1533, %v1527
      %v1535 = vadd.f32 %v1534, %v1528
      %v1536 = vadd.f32 %v1535, %v1529
      %v1537 = vrot.slane %v1536, 4
      %v1538 = vadd.f32 %v1536, %v1537
      %v1539 = vrot.slane %v1538, 2
      %v1540 = vadd.f32 %v1538, %v1539
      %v1541 = vrot.slane %v1540, 1
      %v1542 = vadd.f32 %v1540, %v1541
      %v1543 = vrcp.pop 64.0
      %v1544 = vmul.f32 %v1542, %v1543
      %v1545 = vpack.c.bf16 %v1544, %v1544
      %v1546 = vld [vmem:[%s12] sm:$0xf]
      %v1547 = vld [vmem:[%s12 + $0x4] sm:$0xf]
      %v1548 = vld [vmem:[%s12 + $0x8] sm:$0xf]
      %v1549 = vld [vmem:[%s12 + $0xc] sm:$0xf]
      %v1550 = vld [vmem:[%s12 + $0x10] sm:$0xf]
      %v1551 = vld [vmem:[%s12 + $0x14] sm:$0xf]
      %v1552 = vld [vmem:[%s12 + $0x18] sm:$0xf]
      %v1553 = vld [vmem:[%s12 + $0x1c] sm:$0xf]
      %v1554 = vld [vmem:[%s12 + $0x20] sm:$0xf]
      %v1555 = vld [vmem:[%s12 + $0x24] sm:$0xf]
      %v1556 = vld [vmem:[%s12 + $0x28] sm:$0xf]
      %v1557 = vld [vmem:[%s12 + $0x2c] sm:$0xf]
      %v1558 = vld [vmem:[%s12 + $0x30] sm:$0xf]
      %v1559 = vld [vmem:[%s12 + $0x34] sm:$0xf]
      %v1560 = vld [vmem:[%s12 + $0x38] sm:$0xf]
      %v1561 = vld [vmem:[%s12 + $0x3c] sm:$0xf]
      %v1562 = vld [vmem:[%s13] sm:$0x1]
      %v1579 = vunpack.c.l.b16 %v1546
      %v1580 = vunpack.c.l.b16 %v1547
      %v1581 = vunpack.c.l.b16 %v1548
      %v1582 = vunpack.c.l.b16 %v1549
      %v1583 = vunpack.c.l.b16 %v1550
      %v1584 = vunpack.c.l.b16 %v1551
      %v1585 = vunpack.c.l.b16 %v1552
      %v1586 = vunpack.c.l.b16 %v1553
      %v1587 = vunpack.c.l.b16 %v1554
      %v1588 = vunpack.c.l.b16 %v1555
      %v1589 = vunpack.c.l.b16 %v1556
      %v1590 = vunpack.c.l.b16 %v1557
      %v1591 = vunpack.c.l.b16 %v1558
      %v1592 = vunpack.c.l.b16 %v1559
      %v1593 = vunpack.c.l.b16 %v1560
      %v1594 = vunpack.c.l.b16 %v1561
      %v1595 = vpack.c.b16 %v1580, %v1579
      %v1596 = vpack.c.b16 %v1582, %v1581
      %v1597 = vpack.c.b16 %v1584, %v1583
      %v1598 = vpack.c.b16 %v1586, %v1585
      %v1599 = vpack.c.b16 %v1588, %v1587
      %v1600 = vpack.c.b16 %v1590, %v1589
      %v1601 = vpack.c.b16 %v1592, %v1591
      %v1602 = vpack.c.b16 %v1594, %v1593
      %1611 = vmatprep.subr.bf16.mxu0 0
      %1612 = vmatpush1.bf16.msra.mxu0 %v1595
      %1613 = vmatprep.subr.bf16.mxu0 0
      %1614 = vmatpush1.bf16.msra.mxu0 %v1596
      %1615 = vmatprep.subr.bf16.mxu0 0
      %1616 = vmatpush1.bf16.msra.mxu0 %v1597
      %1617 = vmatprep.subr.bf16.mxu0 0
      %1618 = vmatpush1.bf16.msra.mxu0 %v1598
      %1619 = vmatprep.subr.bf16.mxu0 0
      %1620 = vmatpush1.bf16.msra.mxu0 %v1599
      %1621 = vmatprep.subr.bf16.mxu0 0
      %1622 = vmatpush1.bf16.msra.mxu0 %v1600
      %1623 = vmatprep.subr.bf16.mxu0 0
      %1624 = vmatpush1.bf16.msra.mxu0 %v1601
      %1625 = vmatprep.subr.bf16.mxu0 0
      %1626 = vmatpush1.bf16.msra.mxu0 %v1602
      %1627 = vmatprep.subr.bf16.mxu0 0
      %1628 = vmatpush1.bf16.msra.mxu0 0
      %1629 = vmatprep.subr.bf16.mxu0 0
      %1630 = vmatpush1.bf16.msra.mxu0 0
      %1631 = vmatprep.subr.bf16.mxu0 0
      %1632 = vmatpush1.bf16.msra.mxu0 0
      %1633 = vmatprep.subr.bf16.mxu0 0
      %1634 = vmatpush1.bf16.msra.mxu0 0
      %1635 = vmatprep.subr.bf16.mxu0 0
      %1636 = vmatpush1.bf16.msra.mxu0 0
      %1637 = vmatprep.subr.bf16.mxu0 0
      %1638 = vmatpush1.bf16.msra.mxu0 0
      %1639 = vmatprep.subr.bf16.mxu0 0
      %1640 = vmatpush1.bf16.msra.mxu0 0
      %1641 = vmatprep.subr.bf16.mxu0 0
      %1642 = vmatpush1.bf16.msra.mxu0 0
      %1643 = vmatprep.mubr.bf16.mxu0 0
      %1644 = vmatmul.mubr.bf16.gmra.mrb[0].mxu0 %v1545
      %v1645 = vpop.f32.mrb[0].mxu0
      %v1646 = vadd.f32 %v1562, %v1645
      %v1647 = vpop.f32.mrb[0].mxu0
      %v1648 = vpop.f32.mrb[0].mxu0
      %v1649 = vpop.f32.mrb[0].mxu0
      %1650 = vdwg.mxu0
      %v1651 = vmul.f32 %v1646, %v1646
      %vm1652 = vcmask 1040384
      %v1653 = vsel %vm1652, %v1651, 0.0
      %1654 = vadd.xlane.f32.xlu0 %v1653
      %v1655 = vpop.xlane.xlu0 %1654
      %v1656 = vmax.f32 %v1655, 1e-24
      %v1657 = vrsqrt.pop %v1656
      %v1658 = vmul.f32 %v1646, %v1657
      %v1659 = vlaneseq
      %v1660 = vshrl.u32 %v1659, 7
      %v1661 = vsub.s32 0, %v1660
      %v1662 = vrot.slane %v1658, %v1661
      %1663 = vst [vmem:[%s465] sm:$0xff] %v1662
      %p1664 = scmp.lt.s32.totalorder %s25, 1
      %s1665 = scalar_select %p1664, %s25, 1
      %s1666 = smul.addr %s1665, 8
      %s1667 = scalar_lea.vmem %s14, %s1666
      // Predicated region
      $region77: #{simase_forward.1} parent=75 // pred_check
        %p1668 = pneg %p342
      $region78: #{simase_forward.1} parent=75 // pred_check_branch
        %1670 = sbr.rel (%p1668) target = $region80
      $region79: #{simase_forward.1} parent=75 // pred_region
        _
      $region80: #{simase_forward.1} parent=75 // pred_fallthru
        _
    $region76: #{simase_forward.1} parent=5 // pred_fallthru
      _
    %p1671 = scmp.le.s32.totalorder 2, %s20
    // Predicated region
    $region81: #{simase_forward.1} parent=5 // pred_check
      %p1672 = pneg %p1671
    $region82: #{simase_forward.1} parent=5 // pred_check_branch
      %1674 = sbr.rel (%p1672) target = $region84
    $region83: #{simase_forward.1} parent=5 // pred_region
      %s1675 = ssub.s32 %s20, 2
      // Predicated region
      $region85: #{simase_forward.1} parent=83 // pred_check
        %p1676 = pneg %p348
      $region86: #{simase_forward.1} parent=83 // pred_check_branch
        %1678 = sbr.rel (%p1676) target = $region88
      $region87: #{simase_forward.1} parent=83 // pred_region
        %p1679 = scmp.lt.s32.totalorder %s26, 1
        %s1680 = scalar_select %p1679, %s26, 1
        %s1681 = smul.addr %s1680, 8
        %s1682 = scalar_lea.vmem %s14, %s1681
      $region88: #{simase_forward.1} parent=83 // pred_fallthru
        _
    $region84: #{simase_forward.1} parent=5 // pred_fallthru
      _
  $region6: #{simase_forward.1} parent=0 // loop_footer
    %s24 = sadd.s32 1, %s20
  $region7: #{simase_forward.1} parent=0 // loop_footer_branch
    %19 = sbr.rel target = $region3
  $region8: #{simase_forward.1} parent=0 // loop_exit
    _

</llo_original>
